<compile_context>
chip_gen: v5e
topology: v5e:2x2
jax: 0.10.0
libtpu: 0.0.40
codegen_flags: <defaults>
</compile_context>

<pallas_src>
import functools

import jax
import jax.numpy as jnp
from jax.experimental import pallas as pl
from jax.experimental.pallas import tpu as pltpu


# ----------------------------------------------------------------------------
# Fused kernel: 3 wavefronted LSTM layers over the full sequence + Linear+ReLU.
# grid = () — single invocation, everything resident in VMEM.
# ----------------------------------------------------------------------------
def fused_lstm_kernel(x_ref, w0i_ref, b0_ref,
                      w01_ref, b1_ref,
                      w12_ref, b2_ref,
                      w2h_ref, wl_ref, bl_ref,
                      out_ref,
                      *, seq_len, batch, hidden, out_dim):
    S, B, H = seq_len, batch, hidden

    # Hoisted layer-0 input projection for the WHOLE sequence: one big MXU matmul.
    xp0 = jnp.dot(x_ref[...], w0i_ref[...],
                  preferred_element_type=jnp.float32) + b0_ref[...]       # (S*B, 4H)

    w01 = w01_ref[...]      # (H, 8H) = [W_hh0 | W_ih1]
    w12 = w12_ref[...]      # (H, 8H) = [W_hh1 | W_ih2]
    w2h = w2h_ref[...]      # (H, 4H) =  W_hh2
    b1 = b1_ref[...]        # (1, 4H)  (b_ih1 + b_hh1)
    b2 = b2_ref[...]        # (1, 4H)  (b_ih2 + b_hh2)

    def cell(gates, c_prev):
        # Full-(B,4H)-lane-width nonlinearities (EUP), then static per-gate slices.
        sig = jax.nn.sigmoid(gates)
        tnh = jnp.tanh(gates)
        i_g = sig[:, 0 * H:1 * H]
        f_g = sig[:, 1 * H:2 * H]
        g_g = tnh[:, 2 * H:3 * H]
        o_g = sig[:, 3 * H:4 * H]
        c_new = f_g * c_prev + i_g * g_g
        h_new = o_g * jnp.tanh(c_new)
        return h_new, c_new

    zbh = jnp.zeros((B, H), jnp.float32)
    zb4h = jnp.zeros((B, 4 * H), jnp.float32)
    h = [zbh, zbh, zbh]
    c = [zbh, zbh, zbh]
    rec = [zb4h, zb4h, zb4h]     # pending h_l[t-1] @ W_hh_l   (zero for h_l[-1] = 0)
    inp = [None, zb4h, zb4h]     # pending h_{l-1}[t] @ W_ih_l

    # Wavefront: at step w, layer0 does time w, layer1 time w-1, layer2 time w-2.
    # S is small & static -> fully unrolled; the three branches in one step are
    # independent dependency chains.
    for w in range(S + 2):
        n_h, n_c = list(h), list(c)
        n_rec, n_inp = list(rec), list(inp)

        if w < S:                                       # layer 0 @ t = w
            t = w
            g0 = xp0[t * B:(t + 1) * B, :] + rec[0]
            h0, c0 = cell(g0, c[0])
            fused0 = jnp.dot(h0, w01, preferred_element_type=jnp.float32)   # (B, 8H)
            n_rec[0] = fused0[:, :4 * H]                # -> layer0 gates @ t+1
            n_inp[1] = fused0[:, 4 * H:]                # -> layer1 gates @ t
            n_h[0], n_c[0] = h0, c0

        if 0 <= w - 1 < S:                              # layer 1 @ t = w-1
            g1 = inp[1] + rec[1] + b1
            h1, c1 = cell(g1, c[1])
            fused1 = jnp.dot(h1, w12, preferred_element_type=jnp.float32)   # (B, 8H)
            n_rec[1] = fused1[:, :4 * H]
            n_inp[2] = fused1[:, 4 * H:]
            n_h[1], n_c[1] = h1, c1

        if 0 <= w - 2 < S:                              # layer 2 @ t = w-2
            g2 = inp[2] + rec[2] + b2
            h2, c2 = cell(g2, c[2])
            if w - 2 < S - 1:                           # last step's recurrence is dead
                n_rec[2] = jnp.dot(h2, w2h, preferred_element_type=jnp.float32)
            n_h[2], n_c[2] = h2, c2

        h, c, rec, inp = n_h, n_c, n_rec, n_inp

    # Fused head: relu(linear(h_top_last)). Dout is tiny, so keep it off the MXU:
    # VPU elementwise multiply + cross-lane reduce per output column.
    h_top = h[2]                                        # (B, H) == lstm_out[:, -1]
    cols = []
    for d in range(out_dim):
        wd = wl_ref[d:d + 1, :]                         # (1, H)
        cols.append(jnp.sum(h_top * wd, axis=-1, keepdims=True))
    y = jnp.concatenate(cols, axis=1) + bl_ref[...]     # (B, Dout)
    out_ref[...] = jnp.maximum(y, 0.0)


# ----------------------------------------------------------------------------
# Full model forward (matches LSTM.forward: relu(linear(lstm_out[:, -1])).view(-1))
# ----------------------------------------------------------------------------
@jax.jit
def lstm_model_forward(x_bf, p):
    """x_bf: (batch, seq, input_dim), batch-first like the PyTorch module."""
    B, S, Din = x_bf.shape
    H = p["w2h"].shape[0]
    Dout = p["b_lin"].shape[1]

    # time-major, flattened: row t*B + b is (time t, batch b)
    x2d = jnp.transpose(x_bf, (1, 0, 2)).reshape(S * B, Din)

    args = (x2d, p["w0i"], p["b0"], p["w01"], p["b1"], p["w12"], p["b2"],
            p["w2h"], p["wl"], p["b_lin"])

    y = pl.pallas_call(
        functools.partial(fused_lstm_kernel, seq_len=S, batch=B, hidden=H,
                          out_dim=Dout),
        out_shape=jax.ShapeDtypeStruct((B, Dout), jnp.float32),
        grid=(),
        in_specs=[pl.BlockSpec(a.shape, lambda: (0, 0)) for a in args],
        out_specs=pl.BlockSpec((B, Dout), lambda: (0, 0)),
        compiler_params=pltpu.CompilerParams(vmem_limit_bytes=32 * 1024 * 1024),
    )(*args)
    return y.reshape(-1)


# ----------------------------------------------------------------------------
# Parameter init (PyTorch layout) + packing into the kernel's fused layout.
# ----------------------------------------------------------------------------
def init_raw_params(key, input_dim, hidden_dim, output_dim, num_layers):
    """PyTorch-style uniform(-1/sqrt(H), 1/sqrt(H)) init, PyTorch weight layout."""
    bound = 1.0 / float(hidden_dim) ** 0.5
    layers = []
    for layer in range(num_layers):
        in_dim = input_dim if layer == 0 else hidden_dim
        key, k1, k2, k3, k4 = jax.random.split(key, 5)
        w_ih = jax.random.uniform(k1, (4 * hidden_dim, in_dim), jnp.float32, -bound, bound)
        w_hh = jax.random.uniform(k2, (4 * hidden_dim, hidden_dim), jnp.float32, -bound, bound)
        b_ih = jax.random.uniform(k3, (4 * hidden_dim,), jnp.float32, -bound, bound)
        b_hh = jax.random.uniform(k4, (4 * hidden_dim,), jnp.float32, -bound, bound)
        layers.append((w_ih, w_hh, b_ih, b_hh))
    key, k5, k6 = jax.random.split(key, 3)
    w_lin = jax.random.uniform(k5, (output_dim, hidden_dim), jnp.float32, -bound, bound)
    b_lin = jax.random.uniform(k6, (output_dim,), jnp.float32, -bound, bound)
    return {"layers": layers, "w_lin": w_lin, "b_lin": b_lin}


def pack_params(raw):
    """Pre-transpose, fold biases, and fuse W_hh_l with W_ih_{l+1} along 4H axis."""
    (wi0, wh0, bi0, bh0), (wi1, wh1, bi1, bh1), (wi2, wh2, bi2, bh2) = raw["layers"]
    H = wh0.shape[1]
    Dout = raw["w_lin"].shape[0]
    return {
        "w0i": wi0.T,                                        # (Din, 4H)
        "b0": (bi0 + bh0).reshape(1, 4 * H),
        "w01": jnp.concatenate([wh0.T, wi1.T], axis=1),      # (H, 8H) [W_hh0 | W_ih1]
        "b1": (bi1 + bh1).reshape(1, 4 * H),
        "w12": jnp.concatenate([wh1.T, wi2.T], axis=1),      # (H, 8H) [W_hh1 | W_ih2]
        "b2": (bi2 + bh2).reshape(1, 4 * H),
        "w2h": wh2.T,                                        # (H, 4H)
        "wl": raw["w_lin"],                                  # (Dout, H)
        "b_lin": raw["b_lin"].reshape(1, Dout),
    }


# ----------------------------------------------------------------------------
# Pure-JAX reference (eval-mode nn.LSTM + Linear + ReLU), for correctness check.
# ----------------------------------------------------------------------------
def lstm_reference(x_bf, raw):
    B, S, _ = x_bf.shape
    hp = jax.lax.Precision.HIGHEST
    inp = x_bf
    for (w_ih, w_hh, b_ih, b_hh) in raw["layers"]:
        H = w_hh.shape[1]
        h = jnp.zeros((B, H), jnp.float32)
        c = jnp.zeros((B, H), jnp.float32)
        outs = []
        for t in range(S):
            g = (jnp.dot(inp[:, t], w_ih.T, precision=hp) + b_ih
                 + jnp.dot(h, w_hh.T, precision=hp) + b_hh)
            i = jax.nn.sigmoid(g[:, 0 * H:1 * H])
            f = jax.nn.sigmoid(g[:, 1 * H:2 * H])
            gg = jnp.tanh(g[:, 2 * H:3 * H])
            o = jax.nn.sigmoid(g[:, 3 * H:4 * H])
            c = f * c + i * gg
            h = o * jnp.tanh(c)
            outs.append(h)
        inp = jnp.stack(outs, axis=1)
        # dropout between layers is identity in eval mode
    y = jnp.maximum(jnp.dot(inp[:, -1], raw["w_lin"].T, precision=hp) + raw["b_lin"], 0.0)
    return y.reshape(-1)


if __name__ == "__main__":
    batch, seq, input_dim, hidden_dim, output_dim, num_layers = 8, 8, 16, 32, 1, 3

    key = jax.random.PRNGKey(0)
    key, kx = jax.random.split(key)
    x = jax.random.normal(kx, (batch, seq, input_dim), jnp.float32)

    raw = init_raw_params(key, input_dim, hidden_dim, output_dim, num_layers)
    packed = pack_params(raw)

    y = lstm_model_forward(x, packed)
    jax.block_until_ready(y)
    assert y.shape == (batch * output_dim,), y.shape
    assert bool(jnp.all(jnp.isfinite(y))), "non-finite output"

    y_ref = lstm_reference(x, raw)
    assert jnp.allclose(y, y_ref, atol=2e-2, rtol=2e-2), (y, y_ref)

    print("KERNEL_OK")
</pallas_src>

<mosaic_0001>
module attributes {stable_mosaic.version = 11 : i64} {
  func.func @fused_lstm_kernel(%arg0: memref<64x16xf32, #tpu.memory_space<vmem>>, %arg1: memref<16x128xf32, #tpu.memory_space<vmem>>, %arg2: memref<1x128xf32, #tpu.memory_space<vmem>>, %arg3: memref<32x256xf32, #tpu.memory_space<vmem>>, %arg4: memref<1x128xf32, #tpu.memory_space<vmem>>, %arg5: memref<32x256xf32, #tpu.memory_space<vmem>>, %arg6: memref<1x128xf32, #tpu.memory_space<vmem>>, %arg7: memref<32x128xf32, #tpu.memory_space<vmem>>, %arg8: memref<1x32xf32, #tpu.memory_space<vmem>>, %arg9: memref<1x1xf32, #tpu.memory_space<vmem>>, %arg10: memref<8x1xf32, #tpu.memory_space<vmem>>) attributes {dimension_semantics = [], scalar_prefetch = 0 : i64, scratch_operands = 0 : i64, tpu.core_type = #tpu.core_type<tc>} {
    %c0 = arith.constant 0 : index
    %c0_0 = arith.constant 0 : index
    %0 = vector.load %arg0[%c0, %c0_0] : memref<64x16xf32, #tpu.memory_space<vmem>>, vector<64x16xf32>
    %c0_1 = arith.constant 0 : index
    %c0_2 = arith.constant 0 : index
    %1 = vector.load %arg1[%c0_1, %c0_2] : memref<16x128xf32, #tpu.memory_space<vmem>>, vector<16x128xf32>
    %cst = arith.constant dense<0.000000e+00> : vector<64x128xf32>
    %2 = tpu.matmul %0, %1, %cst {dimension_numbers = #tpu.dot_dimension_numbers<[1], [0], [0], [1], [0, 0, 1, 1], [], []>} : vector<64x16xf32>, vector<16x128xf32>, vector<64x128xf32> -> vector<64x128xf32>
    %c0_3 = arith.constant 0 : index
    %c0_4 = arith.constant 0 : index
    %3 = vector.load %arg2[%c0_3, %c0_4] : memref<1x128xf32, #tpu.memory_space<vmem>>, vector<1x128xf32>
    %4 = vector.broadcast %3 : vector<1x128xf32> to vector<64x128xf32>
    %5 = arith.addf %2, %4 : vector<64x128xf32>
    %c0_5 = arith.constant 0 : index
    %c0_6 = arith.constant 0 : index
    %6 = vector.load %arg3[%c0_5, %c0_6] : memref<32x256xf32, #tpu.memory_space<vmem>>, vector<32x256xf32>
    %c0_7 = arith.constant 0 : index
    %c0_8 = arith.constant 0 : index
    %7 = vector.load %arg5[%c0_7, %c0_8] : memref<32x256xf32, #tpu.memory_space<vmem>>, vector<32x256xf32>
    %c0_9 = arith.constant 0 : index
    %c0_10 = arith.constant 0 : index
    %8 = vector.load %arg7[%c0_9, %c0_10] : memref<32x128xf32, #tpu.memory_space<vmem>>, vector<32x128xf32>
    %c0_11 = arith.constant 0 : index
    %c0_12 = arith.constant 0 : index
    %9 = vector.load %arg4[%c0_11, %c0_12] : memref<1x128xf32, #tpu.memory_space<vmem>>, vector<1x128xf32>
    %c0_13 = arith.constant 0 : index
    %c0_14 = arith.constant 0 : index
    %10 = vector.load %arg6[%c0_13, %c0_14] : memref<1x128xf32, #tpu.memory_space<vmem>>, vector<1x128xf32>
    %cst_15 = arith.constant 0.000000e+00 : f32
    %11 = vector.broadcast %cst_15 : f32 to vector<8x32xf32>
    %cst_16 = arith.constant 0.000000e+00 : f32
    %12 = vector.broadcast %cst_16 : f32 to vector<8x128xf32>
    %13 = vector.extract_strided_slice %5 {offsets = [0, 0], sizes = [8, 128], strides = [1, 1]} : vector<64x128xf32> to vector<8x128xf32>
    %14 = arith.addf %13, %12 : vector<8x128xf32>
    %15 = arith.negf %14 : vector<8x128xf32>
    %16 = math.exp %15 : vector<8x128xf32>
    %cst_17 = arith.constant 1.000000e+00 : f32
    %17 = vector.broadcast %cst_17 : f32 to vector<8x128xf32>
    %18 = arith.addf %17, %16 : vector<8x128xf32>
    %19 = arith.divf %17, %18 : vector<8x128xf32>
    %20 = math.tanh %14 : vector<8x128xf32>
    %21 = vector.extract_strided_slice %19 {offsets = [0, 0], sizes = [8, 32], strides = [1, 1]} : vector<8x128xf32> to vector<8x32xf32>
    %22 = vector.extract_strided_slice %19 {offsets = [0, 32], sizes = [8, 32], strides = [1, 1]} : vector<8x128xf32> to vector<8x32xf32>
    %23 = vector.extract_strided_slice %20 {offsets = [0, 64], sizes = [8, 32], strides = [1, 1]} : vector<8x128xf32> to vector<8x32xf32>
    %24 = vector.extract_strided_slice %19 {offsets = [0, 96], sizes = [8, 32], strides = [1, 1]} : vector<8x128xf32> to vector<8x32xf32>
    %25 = arith.mulf %22, %11 : vector<8x32xf32>
    %26 = arith.mulf %21, %23 : vector<8x32xf32>
    %27 = arith.addf %25, %26 : vector<8x32xf32>
    %28 = math.tanh %27 : vector<8x32xf32>
    %29 = arith.mulf %24, %28 : vector<8x32xf32>
    %cst_18 = arith.constant dense<0.000000e+00> : vector<8x256xf32>
    %30 = tpu.matmul %29, %6, %cst_18 {dimension_numbers = #tpu.dot_dimension_numbers<[1], [0], [0], [1], [0, 0, 1, 1], [], []>} : vector<8x32xf32>, vector<32x256xf32>, vector<8x256xf32> -> vector<8x256xf32>
    %31 = vector.extract_strided_slice %30 {offsets = [0, 0], sizes = [8, 128], strides = [1, 1]} : vector<8x256xf32> to vector<8x128xf32>
    %32 = vector.extract_strided_slice %30 {offsets = [0, 128], sizes = [8, 128], strides = [1, 1]} : vector<8x256xf32> to vector<8x128xf32>
    %33 = vector.extract_strided_slice %5 {offsets = [8, 0], sizes = [8, 128], strides = [1, 1]} : vector<64x128xf32> to vector<8x128xf32>
    %34 = arith.addf %33, %31 : vector<8x128xf32>
    %35 = arith.negf %34 : vector<8x128xf32>
    %36 = math.exp %35 : vector<8x128xf32>
    %cst_19 = arith.constant 1.000000e+00 : f32
    %37 = vector.broadcast %cst_19 : f32 to vector<8x128xf32>
    %38 = arith.addf %37, %36 : vector<8x128xf32>
    %39 = arith.divf %37, %38 : vector<8x128xf32>
    %40 = math.tanh %34 : vector<8x128xf32>
    %41 = vector.extract_strided_slice %39 {offsets = [0, 0], sizes = [8, 32], strides = [1, 1]} : vector<8x128xf32> to vector<8x32xf32>
    %42 = vector.extract_strided_slice %39 {offsets = [0, 32], sizes = [8, 32], strides = [1, 1]} : vector<8x128xf32> to vector<8x32xf32>
    %43 = vector.extract_strided_slice %40 {offsets = [0, 64], sizes = [8, 32], strides = [1, 1]} : vector<8x128xf32> to vector<8x32xf32>
    %44 = vector.extract_strided_slice %39 {offsets = [0, 96], sizes = [8, 32], strides = [1, 1]} : vector<8x128xf32> to vector<8x32xf32>
    %45 = arith.mulf %42, %27 : vector<8x32xf32>
    %46 = arith.mulf %41, %43 : vector<8x32xf32>
    %47 = arith.addf %45, %46 : vector<8x32xf32>
    %48 = math.tanh %47 : vector<8x32xf32>
    %49 = arith.mulf %44, %48 : vector<8x32xf32>
    %cst_20 = arith.constant dense<0.000000e+00> : vector<8x256xf32>
    %50 = tpu.matmul %49, %6, %cst_20 {dimension_numbers = #tpu.dot_dimension_numbers<[1], [0], [0], [1], [0, 0, 1, 1], [], []>} : vector<8x32xf32>, vector<32x256xf32>, vector<8x256xf32> -> vector<8x256xf32>
    %51 = vector.extract_strided_slice %50 {offsets = [0, 0], sizes = [8, 128], strides = [1, 1]} : vector<8x256xf32> to vector<8x128xf32>
    %52 = vector.extract_strided_slice %50 {offsets = [0, 128], sizes = [8, 128], strides = [1, 1]} : vector<8x256xf32> to vector<8x128xf32>
    %53 = arith.addf %32, %12 : vector<8x128xf32>
    %54 = vector.broadcast %9 : vector<1x128xf32> to vector<8x128xf32>
    %55 = arith.addf %53, %54 : vector<8x128xf32>
    %56 = arith.negf %55 : vector<8x128xf32>
    %57 = math.exp %56 : vector<8x128xf32>
    %cst_21 = arith.constant 1.000000e+00 : f32
    %58 = vector.broadcast %cst_21 : f32 to vector<8x128xf32>
    %59 = arith.addf %58, %57 : vector<8x128xf32>
    %60 = arith.divf %58, %59 : vector<8x128xf32>
    %61 = math.tanh %55 : vector<8x128xf32>
    %62 = vector.extract_strided_slice %60 {offsets = [0, 0], sizes = [8, 32], strides = [1, 1]} : vector<8x128xf32> to vector<8x32xf32>
    %63 = vector.extract_strided_slice %60 {offsets = [0, 32], sizes = [8, 32], strides = [1, 1]} : vector<8x128xf32> to vector<8x32xf32>
    %64 = vector.extract_strided_slice %61 {offsets = [0, 64], sizes = [8, 32], strides = [1, 1]} : vector<8x128xf32> to vector<8x32xf32>
    %65 = vector.extract_strided_slice %60 {offsets = [0, 96], sizes = [8, 32], strides = [1, 1]} : vector<8x128xf32> to vector<8x32xf32>
    %66 = arith.mulf %63, %11 : vector<8x32xf32>
    %67 = arith.mulf %62, %64 : vector<8x32xf32>
    %68 = arith.addf %66, %67 : vector<8x32xf32>
    %69 = math.tanh %68 : vector<8x32xf32>
    %70 = arith.mulf %65, %69 : vector<8x32xf32>
    %cst_22 = arith.constant dense<0.000000e+00> : vector<8x256xf32>
    %71 = tpu.matmul %70, %7, %cst_22 {dimension_numbers = #tpu.dot_dimension_numbers<[1], [0], [0], [1], [0, 0, 1, 1], [], []>} : vector<8x32xf32>, vector<32x256xf32>, vector<8x256xf32> -> vector<8x256xf32>
    %72 = vector.extract_strided_slice %71 {offsets = [0, 0], sizes = [8, 128], strides = [1, 1]} : vector<8x256xf32> to vector<8x128xf32>
    %73 = vector.extract_strided_slice %71 {offsets = [0, 128], sizes = [8, 128], strides = [1, 1]} : vector<8x256xf32> to vector<8x128xf32>
    %74 = vector.extract_strided_slice %5 {offsets = [16, 0], sizes = [8, 128], strides = [1, 1]} : vector<64x128xf32> to vector<8x128xf32>
    %75 = arith.addf %74, %51 : vector<8x128xf32>
    %76 = arith.negf %75 : vector<8x128xf32>
    %77 = math.exp %76 : vector<8x128xf32>
    %cst_23 = arith.constant 1.000000e+00 : f32
    %78 = vector.broadcast %cst_23 : f32 to vector<8x128xf32>
    %79 = arith.addf %78, %77 : vector<8x128xf32>
    %80 = arith.divf %78, %79 : vector<8x128xf32>
    %81 = math.tanh %75 : vector<8x128xf32>
    %82 = vector.extract_strided_slice %80 {offsets = [0, 0], sizes = [8, 32], strides = [1, 1]} : vector<8x128xf32> to vector<8x32xf32>
    %83 = vector.extract_strided_slice %80 {offsets = [0, 32], sizes = [8, 32], strides = [1, 1]} : vector<8x128xf32> to vector<8x32xf32>
    %84 = vector.extract_strided_slice %81 {offsets = [0, 64], sizes = [8, 32], strides = [1, 1]} : vector<8x128xf32> to vector<8x32xf32>
    %85 = vector.extract_strided_slice %80 {offsets = [0, 96], sizes = [8, 32], strides = [1, 1]} : vector<8x128xf32> to vector<8x32xf32>
    %86 = arith.mulf %83, %47 : vector<8x32xf32>
    %87 = arith.mulf %82, %84 : vector<8x32xf32>
    %88 = arith.addf %86, %87 : vector<8x32xf32>
    %89 = math.tanh %88 : vector<8x32xf32>
    %90 = arith.mulf %85, %89 : vector<8x32xf32>
    %cst_24 = arith.constant dense<0.000000e+00> : vector<8x256xf32>
    %91 = tpu.matmul %90, %6, %cst_24 {dimension_numbers = #tpu.dot_dimension_numbers<[1], [0], [0], [1], [0, 0, 1, 1], [], []>} : vector<8x32xf32>, vector<32x256xf32>, vector<8x256xf32> -> vector<8x256xf32>
    %92 = vector.extract_strided_slice %91 {offsets = [0, 0], sizes = [8, 128], strides = [1, 1]} : vector<8x256xf32> to vector<8x128xf32>
    %93 = vector.extract_strided_slice %91 {offsets = [0, 128], sizes = [8, 128], strides = [1, 1]} : vector<8x256xf32> to vector<8x128xf32>
    %94 = arith.addf %52, %72 : vector<8x128xf32>
    %95 = vector.broadcast %9 : vector<1x128xf32> to vector<8x128xf32>
    %96 = arith.addf %94, %95 : vector<8x128xf32>
    %97 = arith.negf %96 : vector<8x128xf32>
    %98 = math.exp %97 : vector<8x128xf32>
    %cst_25 = arith.constant 1.000000e+00 : f32
    %99 = vector.broadcast %cst_25 : f32 to vector<8x128xf32>
    %100 = arith.addf %99, %98 : vector<8x128xf32>
    %101 = arith.divf %99, %100 : vector<8x128xf32>
    %102 = math.tanh %96 : vector<8x128xf32>
    %103 = vector.extract_strided_slice %101 {offsets = [0, 0], sizes = [8, 32], strides = [1, 1]} : vector<8x128xf32> to vector<8x32xf32>
    %104 = vector.extract_strided_slice %101 {offsets = [0, 32], sizes = [8, 32], strides = [1, 1]} : vector<8x128xf32> to vector<8x32xf32>
    %105 = vector.extract_strided_slice %102 {offsets = [0, 64], sizes = [8, 32], strides = [1, 1]} : vector<8x128xf32> to vector<8x32xf32>
    %106 = vector.extract_strided_slice %101 {offsets = [0, 96], sizes = [8, 32], strides = [1, 1]} : vector<8x128xf32> to vector<8x32xf32>
    %107 = arith.mulf %104, %68 : vector<8x32xf32>
    %108 = arith.mulf %103, %105 : vector<8x32xf32>
    %109 = arith.addf %107, %108 : vector<8x32xf32>
    %110 = math.tanh %109 : vector<8x32xf32>
    %111 = arith.mulf %106, %110 : vector<8x32xf32>
    %cst_26 = arith.constant dense<0.000000e+00> : vector<8x256xf32>
    %112 = tpu.matmul %111, %7, %cst_26 {dimension_numbers = #tpu.dot_dimension_numbers<[1], [0], [0], [1], [0, 0, 1, 1], [], []>} : vector<8x32xf32>, vector<32x256xf32>, vector<8x256xf32> -> vector<8x256xf32>
    %113 = vector.extract_strided_slice %112 {offsets = [0, 0], sizes = [8, 128], strides = [1, 1]} : vector<8x256xf32> to vector<8x128xf32>
    %114 = vector.extract_strided_slice %112 {offsets = [0, 128], sizes = [8, 128], strides = [1, 1]} : vector<8x256xf32> to vector<8x128xf32>
    %115 = arith.addf %73, %12 : vector<8x128xf32>
    %116 = vector.broadcast %10 : vector<1x128xf32> to vector<8x128xf32>
    %117 = arith.addf %115, %116 : vector<8x128xf32>
    %118 = arith.negf %117 : vector<8x128xf32>
    %119 = math.exp %118 : vector<8x128xf32>
    %cst_27 = arith.constant 1.000000e+00 : f32
    %120 = vector.broadcast %cst_27 : f32 to vector<8x128xf32>
    %121 = arith.addf %120, %119 : vector<8x128xf32>
    %122 = arith.divf %120, %121 : vector<8x128xf32>
    %123 = math.tanh %117 : vector<8x128xf32>
    %124 = vector.extract_strided_slice %122 {offsets = [0, 0], sizes = [8, 32], strides = [1, 1]} : vector<8x128xf32> to vector<8x32xf32>
    %125 = vector.extract_strided_slice %122 {offsets = [0, 32], sizes = [8, 32], strides = [1, 1]} : vector<8x128xf32> to vector<8x32xf32>
    %126 = vector.extract_strided_slice %123 {offsets = [0, 64], sizes = [8, 32], strides = [1, 1]} : vector<8x128xf32> to vector<8x32xf32>
    %127 = vector.extract_strided_slice %122 {offsets = [0, 96], sizes = [8, 32], strides = [1, 1]} : vector<8x128xf32> to vector<8x32xf32>
    %128 = arith.mulf %125, %11 : vector<8x32xf32>
    %129 = arith.mulf %124, %126 : vector<8x32xf32>
    %130 = arith.addf %128, %129 : vector<8x32xf32>
    %131 = math.tanh %130 : vector<8x32xf32>
    %132 = arith.mulf %127, %131 : vector<8x32xf32>
    %cst_28 = arith.constant dense<0.000000e+00> : vector<8x128xf32>
    %133 = tpu.matmul %132, %8, %cst_28 {dimension_numbers = #tpu.dot_dimension_numbers<[1], [0], [0], [1], [0, 0, 1, 1], [], []>} : vector<8x32xf32>, vector<32x128xf32>, vector<8x128xf32> -> vector<8x128xf32>
    %134 = vector.extract_strided_slice %5 {offsets = [24, 0], sizes = [8, 128], strides = [1, 1]} : vector<64x128xf32> to vector<8x128xf32>
    %135 = arith.addf %134, %92 : vector<8x128xf32>
    %136 = arith.negf %135 : vector<8x128xf32>
    %137 = math.exp %136 : vector<8x128xf32>
    %cst_29 = arith.constant 1.000000e+00 : f32
    %138 = vector.broadcast %cst_29 : f32 to vector<8x128xf32>
    %139 = arith.addf %138, %137 : vector<8x128xf32>
    %140 = arith.divf %138, %139 : vector<8x128xf32>
    %141 = math.tanh %135 : vector<8x128xf32>
    %142 = vector.extract_strided_slice %140 {offsets = [0, 0], sizes = [8, 32], strides = [1, 1]} : vector<8x128xf32> to vector<8x32xf32>
    %143 = vector.extract_strided_slice %140 {offsets = [0, 32], sizes = [8, 32], strides = [1, 1]} : vector<8x128xf32> to vector<8x32xf32>
    %144 = vector.extract_strided_slice %141 {offsets = [0, 64], sizes = [8, 32], strides = [1, 1]} : vector<8x128xf32> to vector<8x32xf32>
    %145 = vector.extract_strided_slice %140 {offsets = [0, 96], sizes = [8, 32], strides = [1, 1]} : vector<8x128xf32> to vector<8x32xf32>
    %146 = arith.mulf %143, %88 : vector<8x32xf32>
    %147 = arith.mulf %142, %144 : vector<8x32xf32>
    %148 = arith.addf %146, %147 : vector<8x32xf32>
    %149 = math.tanh %148 : vector<8x32xf32>
    %150 = arith.mulf %145, %149 : vector<8x32xf32>
    %cst_30 = arith.constant dense<0.000000e+00> : vector<8x256xf32>
    %151 = tpu.matmul %150, %6, %cst_30 {dimension_numbers = #tpu.dot_dimension_numbers<[1], [0], [0], [1], [0, 0, 1, 1], [], []>} : vector<8x32xf32>, vector<32x256xf32>, vector<8x256xf32> -> vector<8x256xf32>
    %152 = vector.extract_strided_slice %151 {offsets = [0, 0], sizes = [8, 128], strides = [1, 1]} : vector<8x256xf32> to vector<8x128xf32>
    %153 = vector.extract_strided_slice %151 {offsets = [0, 128], sizes = [8, 128], strides = [1, 1]} : vector<8x256xf32> to vector<8x128xf32>
    %154 = arith.addf %93, %113 : vector<8x128xf32>
    %155 = vector.broadcast %9 : vector<1x128xf32> to vector<8x128xf32>
    %156 = arith.addf %154, %155 : vector<8x128xf32>
    %157 = arith.negf %156 : vector<8x128xf32>
    %158 = math.exp %157 : vector<8x128xf32>
    %cst_31 = arith.constant 1.000000e+00 : f32
    %159 = vector.broadcast %cst_31 : f32 to vector<8x128xf32>
    %160 = arith.addf %159, %158 : vector<8x128xf32>
    %161 = arith.divf %159, %160 : vector<8x128xf32>
    %162 = math.tanh %156 : vector<8x128xf32>
    %163 = vector.extract_strided_slice %161 {offsets = [0, 0], sizes = [8, 32], strides = [1, 1]} : vector<8x128xf32> to vector<8x32xf32>
    %164 = vector.extract_strided_slice %161 {offsets = [0, 32], sizes = [8, 32], strides = [1, 1]} : vector<8x128xf32> to vector<8x32xf32>
    %165 = vector.extract_strided_slice %162 {offsets = [0, 64], sizes = [8, 32], strides = [1, 1]} : vector<8x128xf32> to vector<8x32xf32>
    %166 = vector.extract_strided_slice %161 {offsets = [0, 96], sizes = [8, 32], strides = [1, 1]} : vector<8x128xf32> to vector<8x32xf32>
    %167 = arith.mulf %164, %109 : vector<8x32xf32>
    %168 = arith.mulf %163, %165 : vector<8x32xf32>
    %169 = arith.addf %167, %168 : vector<8x32xf32>
    %170 = math.tanh %169 : vector<8x32xf32>
    %171 = arith.mulf %166, %170 : vector<8x32xf32>
    %cst_32 = arith.constant dense<0.000000e+00> : vector<8x256xf32>
    %172 = tpu.matmul %171, %7, %cst_32 {dimension_numbers = #tpu.dot_dimension_numbers<[1], [0], [0], [1], [0, 0, 1, 1], [], []>} : vector<8x32xf32>, vector<32x256xf32>, vector<8x256xf32> -> vector<8x256xf32>
    %173 = vector.extract_strided_slice %172 {offsets = [0, 0], sizes = [8, 128], strides = [1, 1]} : vector<8x256xf32> to vector<8x128xf32>
    %174 = vector.extract_strided_slice %172 {offsets = [0, 128], sizes = [8, 128], strides = [1, 1]} : vector<8x256xf32> to vector<8x128xf32>
    %175 = arith.addf %114, %133 : vector<8x128xf32>
    %176 = vector.broadcast %10 : vector<1x128xf32> to vector<8x128xf32>
    %177 = arith.addf %175, %176 : vector<8x128xf32>
    %178 = arith.negf %177 : vector<8x128xf32>
    %179 = math.exp %178 : vector<8x128xf32>
    %cst_33 = arith.constant 1.000000e+00 : f32
    %180 = vector.broadcast %cst_33 : f32 to vector<8x128xf32>
    %181 = arith.addf %180, %179 : vector<8x128xf32>
    %182 = arith.divf %180, %181 : vector<8x128xf32>
    %183 = math.tanh %177 : vector<8x128xf32>
    %184 = vector.extract_strided_slice %182 {offsets = [0, 0], sizes = [8, 32], strides = [1, 1]} : vector<8x128xf32> to vector<8x32xf32>
    %185 = vector.extract_strided_slice %182 {offsets = [0, 32], sizes = [8, 32], strides = [1, 1]} : vector<8x128xf32> to vector<8x32xf32>
    %186 = vector.extract_strided_slice %183 {offsets = [0, 64], sizes = [8, 32], strides = [1, 1]} : vector<8x128xf32> to vector<8x32xf32>
    %187 = vector.extract_strided_slice %182 {offsets = [0, 96], sizes = [8, 32], strides = [1, 1]} : vector<8x128xf32> to vector<8x32xf32>
    %188 = arith.mulf %185, %130 : vector<8x32xf32>
    %189 = arith.mulf %184, %186 : vector<8x32xf32>
    %190 = arith.addf %188, %189 : vector<8x32xf32>
    %191 = math.tanh %190 : vector<8x32xf32>
    %192 = arith.mulf %187, %191 : vector<8x32xf32>
    %cst_34 = arith.constant dense<0.000000e+00> : vector<8x128xf32>
    %193 = tpu.matmul %192, %8, %cst_34 {dimension_numbers = #tpu.dot_dimension_numbers<[1], [0], [0], [1], [0, 0, 1, 1], [], []>} : vector<8x32xf32>, vector<32x128xf32>, vector<8x128xf32> -> vector<8x128xf32>
    %194 = vector.extract_strided_slice %5 {offsets = [32, 0], sizes = [8, 128], strides = [1, 1]} : vector<64x128xf32> to vector<8x128xf32>
    %195 = arith.addf %194, %152 : vector<8x128xf32>
    %196 = arith.negf %195 : vector<8x128xf32>
    %197 = math.exp %196 : vector<8x128xf32>
    %cst_35 = arith.constant 1.000000e+00 : f32
    %198 = vector.broadcast %cst_35 : f32 to vector<8x128xf32>
    %199 = arith.addf %198, %197 : vector<8x128xf32>
    %200 = arith.divf %198, %199 : vector<8x128xf32>
    %201 = math.tanh %195 : vector<8x128xf32>
    %202 = vector.extract_strided_slice %200 {offsets = [0, 0], sizes = [8, 32], strides = [1, 1]} : vector<8x128xf32> to vector<8x32xf32>
    %203 = vector.extract_strided_slice %200 {offsets = [0, 32], sizes = [8, 32], strides = [1, 1]} : vector<8x128xf32> to vector<8x32xf32>
    %204 = vector.extract_strided_slice %201 {offsets = [0, 64], sizes = [8, 32], strides = [1, 1]} : vector<8x128xf32> to vector<8x32xf32>
    %205 = vector.extract_strided_slice %200 {offsets = [0, 96], sizes = [8, 32], strides = [1, 1]} : vector<8x128xf32> to vector<8x32xf32>
    %206 = arith.mulf %203, %148 : vector<8x32xf32>
    %207 = arith.mulf %202, %204 : vector<8x32xf32>
    %208 = arith.addf %206, %207 : vector<8x32xf32>
    %209 = math.tanh %208 : vector<8x32xf32>
    %210 = arith.mulf %205, %209 : vector<8x32xf32>
    %cst_36 = arith.constant dense<0.000000e+00> : vector<8x256xf32>
    %211 = tpu.matmul %210, %6, %cst_36 {dimension_numbers = #tpu.dot_dimension_numbers<[1], [0], [0], [1], [0, 0, 1, 1], [], []>} : vector<8x32xf32>, vector<32x256xf32>, vector<8x256xf32> -> vector<8x256xf32>
    %212 = vector.extract_strided_slice %211 {offsets = [0, 0], sizes = [8, 128], strides = [1, 1]} : vector<8x256xf32> to vector<8x128xf32>
    %213 = vector.extract_strided_slice %211 {offsets = [0, 128], sizes = [8, 128], strides = [1, 1]} : vector<8x256xf32> to vector<8x128xf32>
    %214 = arith.addf %153, %173 : vector<8x128xf32>
    %215 = vector.broadcast %9 : vector<1x128xf32> to vector<8x128xf32>
    %216 = arith.addf %214, %215 : vector<8x128xf32>
    %217 = arith.negf %216 : vector<8x128xf32>
    %218 = math.exp %217 : vector<8x128xf32>
    %cst_37 = arith.constant 1.000000e+00 : f32
    %219 = vector.broadcast %cst_37 : f32 to vector<8x128xf32>
    %220 = arith.addf %219, %218 : vector<8x128xf32>
    %221 = arith.divf %219, %220 : vector<8x128xf32>
    %222 = math.tanh %216 : vector<8x128xf32>
    %223 = vector.extract_strided_slice %221 {offsets = [0, 0], sizes = [8, 32], strides = [1, 1]} : vector<8x128xf32> to vector<8x32xf32>
    %224 = vector.extract_strided_slice %221 {offsets = [0, 32], sizes = [8, 32], strides = [1, 1]} : vector<8x128xf32> to vector<8x32xf32>
    %225 = vector.extract_strided_slice %222 {offsets = [0, 64], sizes = [8, 32], strides = [1, 1]} : vector<8x128xf32> to vector<8x32xf32>
    %226 = vector.extract_strided_slice %221 {offsets = [0, 96], sizes = [8, 32], strides = [1, 1]} : vector<8x128xf32> to vector<8x32xf32>
    %227 = arith.mulf %224, %169 : vector<8x32xf32>
    %228 = arith.mulf %223, %225 : vector<8x32xf32>
    %229 = arith.addf %227, %228 : vector<8x32xf32>
    %230 = math.tanh %229 : vector<8x32xf32>
    %231 = arith.mulf %226, %230 : vector<8x32xf32>
    %cst_38 = arith.constant dense<0.000000e+00> : vector<8x256xf32>
    %232 = tpu.matmul %231, %7, %cst_38 {dimension_numbers = #tpu.dot_dimension_numbers<[1], [0], [0], [1], [0, 0, 1, 1], [], []>} : vector<8x32xf32>, vector<32x256xf32>, vector<8x256xf32> -> vector<8x256xf32>
    %233 = vector.extract_strided_slice %232 {offsets = [0, 0], sizes = [8, 128], strides = [1, 1]} : vector<8x256xf32> to vector<8x128xf32>
    %234 = vector.extract_strided_slice %232 {offsets = [0, 128], sizes = [8, 128], strides = [1, 1]} : vector<8x256xf32> to vector<8x128xf32>
    %235 = arith.addf %174, %193 : vector<8x128xf32>
    %236 = vector.broadcast %10 : vector<1x128xf32> to vector<8x128xf32>
    %237 = arith.addf %235, %236 : vector<8x128xf32>
    %238 = arith.negf %237 : vector<8x128xf32>
    %239 = math.exp %238 : vector<8x128xf32>
    %cst_39 = arith.constant 1.000000e+00 : f32
    %240 = vector.broadcast %cst_39 : f32 to vector<8x128xf32>
    %241 = arith.addf %240, %239 : vector<8x128xf32>
    %242 = arith.divf %240, %241 : vector<8x128xf32>
    %243 = math.tanh %237 : vector<8x128xf32>
    %244 = vector.extract_strided_slice %242 {offsets = [0, 0], sizes = [8, 32], strides = [1, 1]} : vector<8x128xf32> to vector<8x32xf32>
    %245 = vector.extract_strided_slice %242 {offsets = [0, 32], sizes = [8, 32], strides = [1, 1]} : vector<8x128xf32> to vector<8x32xf32>
    %246 = vector.extract_strided_slice %243 {offsets = [0, 64], sizes = [8, 32], strides = [1, 1]} : vector<8x128xf32> to vector<8x32xf32>
    %247 = vector.extract_strided_slice %242 {offsets = [0, 96], sizes = [8, 32], strides = [1, 1]} : vector<8x128xf32> to vector<8x32xf32>
    %248 = arith.mulf %245, %190 : vector<8x32xf32>
    %249 = arith.mulf %244, %246 : vector<8x32xf32>
    %250 = arith.addf %248, %249 : vector<8x32xf32>
    %251 = math.tanh %250 : vector<8x32xf32>
    %252 = arith.mulf %247, %251 : vector<8x32xf32>
    %cst_40 = arith.constant dense<0.000000e+00> : vector<8x128xf32>
    %253 = tpu.matmul %252, %8, %cst_40 {dimension_numbers = #tpu.dot_dimension_numbers<[1], [0], [0], [1], [0, 0, 1, 1], [], []>} : vector<8x32xf32>, vector<32x128xf32>, vector<8x128xf32> -> vector<8x128xf32>
    %254 = vector.extract_strided_slice %5 {offsets = [40, 0], sizes = [8, 128], strides = [1, 1]} : vector<64x128xf32> to vector<8x128xf32>
    %255 = arith.addf %254, %212 : vector<8x128xf32>
    %256 = arith.negf %255 : vector<8x128xf32>
    %257 = math.exp %256 : vector<8x128xf32>
    %cst_41 = arith.constant 1.000000e+00 : f32
    %258 = vector.broadcast %cst_41 : f32 to vector<8x128xf32>
    %259 = arith.addf %258, %257 : vector<8x128xf32>
    %260 = arith.divf %258, %259 : vector<8x128xf32>
    %261 = math.tanh %255 : vector<8x128xf32>
    %262 = vector.extract_strided_slice %260 {offsets = [0, 0], sizes = [8, 32], strides = [1, 1]} : vector<8x128xf32> to vector<8x32xf32>
    %263 = vector.extract_strided_slice %260 {offsets = [0, 32], sizes = [8, 32], strides = [1, 1]} : vector<8x128xf32> to vector<8x32xf32>
    %264 = vector.extract_strided_slice %261 {offsets = [0, 64], sizes = [8, 32], strides = [1, 1]} : vector<8x128xf32> to vector<8x32xf32>
    %265 = vector.extract_strided_slice %260 {offsets = [0, 96], sizes = [8, 32], strides = [1, 1]} : vector<8x128xf32> to vector<8x32xf32>
    %266 = arith.mulf %263, %208 : vector<8x32xf32>
    %267 = arith.mulf %262, %264 : vector<8x32xf32>
    %268 = arith.addf %266, %267 : vector<8x32xf32>
    %269 = math.tanh %268 : vector<8x32xf32>
    %270 = arith.mulf %265, %269 : vector<8x32xf32>
    %cst_42 = arith.constant dense<0.000000e+00> : vector<8x256xf32>
    %271 = tpu.matmul %270, %6, %cst_42 {dimension_numbers = #tpu.dot_dimension_numbers<[1], [0], [0], [1], [0, 0, 1, 1], [], []>} : vector<8x32xf32>, vector<32x256xf32>, vector<8x256xf32> -> vector<8x256xf32>
    %272 = vector.extract_strided_slice %271 {offsets = [0, 0], sizes = [8, 128], strides = [1, 1]} : vector<8x256xf32> to vector<8x128xf32>
    %273 = vector.extract_strided_slice %271 {offsets = [0, 128], sizes = [8, 128], strides = [1, 1]} : vector<8x256xf32> to vector<8x128xf32>
    %274 = arith.addf %213, %233 : vector<8x128xf32>
    %275 = vector.broadcast %9 : vector<1x128xf32> to vector<8x128xf32>
    %276 = arith.addf %274, %275 : vector<8x128xf32>
    %277 = arith.negf %276 : vector<8x128xf32>
    %278 = math.exp %277 : vector<8x128xf32>
    %cst_43 = arith.constant 1.000000e+00 : f32
    %279 = vector.broadcast %cst_43 : f32 to vector<8x128xf32>
    %280 = arith.addf %279, %278 : vector<8x128xf32>
    %281 = arith.divf %279, %280 : vector<8x128xf32>
    %282 = math.tanh %276 : vector<8x128xf32>
    %283 = vector.extract_strided_slice %281 {offsets = [0, 0], sizes = [8, 32], strides = [1, 1]} : vector<8x128xf32> to vector<8x32xf32>
    %284 = vector.extract_strided_slice %281 {offsets = [0, 32], sizes = [8, 32], strides = [1, 1]} : vector<8x128xf32> to vector<8x32xf32>
    %285 = vector.extract_strided_slice %282 {offsets = [0, 64], sizes = [8, 32], strides = [1, 1]} : vector<8x128xf32> to vector<8x32xf32>
    %286 = vector.extract_strided_slice %281 {offsets = [0, 96], sizes = [8, 32], strides = [1, 1]} : vector<8x128xf32> to vector<8x32xf32>
    %287 = arith.mulf %284, %229 : vector<8x32xf32>
    %288 = arith.mulf %283, %285 : vector<8x32xf32>
    %289 = arith.addf %287, %288 : vector<8x32xf32>
    %290 = math.tanh %289 : vector<8x32xf32>
    %291 = arith.mulf %286, %290 : vector<8x32xf32>
    %cst_44 = arith.constant dense<0.000000e+00> : vector<8x256xf32>
    %292 = tpu.matmul %291, %7, %cst_44 {dimension_numbers = #tpu.dot_dimension_numbers<[1], [0], [0], [1], [0, 0, 1, 1], [], []>} : vector<8x32xf32>, vector<32x256xf32>, vector<8x256xf32> -> vector<8x256xf32>
    %293 = vector.extract_strided_slice %292 {offsets = [0, 0], sizes = [8, 128], strides = [1, 1]} : vector<8x256xf32> to vector<8x128xf32>
    %294 = vector.extract_strided_slice %292 {offsets = [0, 128], sizes = [8, 128], strides = [1, 1]} : vector<8x256xf32> to vector<8x128xf32>
    %295 = arith.addf %234, %253 : vector<8x128xf32>
    %296 = vector.broadcast %10 : vector<1x128xf32> to vector<8x128xf32>
    %297 = arith.addf %295, %296 : vector<8x128xf32>
    %298 = arith.negf %297 : vector<8x128xf32>
    %299 = math.exp %298 : vector<8x128xf32>
    %cst_45 = arith.constant 1.000000e+00 : f32
    %300 = vector.broadcast %cst_45 : f32 to vector<8x128xf32>
    %301 = arith.addf %300, %299 : vector<8x128xf32>
    %302 = arith.divf %300, %301 : vector<8x128xf32>
    %303 = math.tanh %297 : vector<8x128xf32>
    %304 = vector.extract_strided_slice %302 {offsets = [0, 0], sizes = [8, 32], strides = [1, 1]} : vector<8x128xf32> to vector<8x32xf32>
    %305 = vector.extract_strided_slice %302 {offsets = [0, 32], sizes = [8, 32], strides = [1, 1]} : vector<8x128xf32> to vector<8x32xf32>
    %306 = vector.extract_strided_slice %303 {offsets = [0, 64], sizes = [8, 32], strides = [1, 1]} : vector<8x128xf32> to vector<8x32xf32>
    %307 = vector.extract_strided_slice %302 {offsets = [0, 96], sizes = [8, 32], strides = [1, 1]} : vector<8x128xf32> to vector<8x32xf32>
    %308 = arith.mulf %305, %250 : vector<8x32xf32>
    %309 = arith.mulf %304, %306 : vector<8x32xf32>
    %310 = arith.addf %308, %309 : vector<8x32xf32>
    %311 = math.tanh %310 : vector<8x32xf32>
    %312 = arith.mulf %307, %311 : vector<8x32xf32>
    %cst_46 = arith.constant dense<0.000000e+00> : vector<8x128xf32>
    %313 = tpu.matmul %312, %8, %cst_46 {dimension_numbers = #tpu.dot_dimension_numbers<[1], [0], [0], [1], [0, 0, 1, 1], [], []>} : vector<8x32xf32>, vector<32x128xf32>, vector<8x128xf32> -> vector<8x128xf32>
    %314 = vector.extract_strided_slice %5 {offsets = [48, 0], sizes = [8, 128], strides = [1, 1]} : vector<64x128xf32> to vector<8x128xf32>
    %315 = arith.addf %314, %272 : vector<8x128xf32>
    %316 = arith.negf %315 : vector<8x128xf32>
    %317 = math.exp %316 : vector<8x128xf32>
    %cst_47 = arith.constant 1.000000e+00 : f32
    %318 = vector.broadcast %cst_47 : f32 to vector<8x128xf32>
    %319 = arith.addf %318, %317 : vector<8x128xf32>
    %320 = arith.divf %318, %319 : vector<8x128xf32>
    %321 = math.tanh %315 : vector<8x128xf32>
    %322 = vector.extract_strided_slice %320 {offsets = [0, 0], sizes = [8, 32], strides = [1, 1]} : vector<8x128xf32> to vector<8x32xf32>
    %323 = vector.extract_strided_slice %320 {offsets = [0, 32], sizes = [8, 32], strides = [1, 1]} : vector<8x128xf32> to vector<8x32xf32>
    %324 = vector.extract_strided_slice %321 {offsets = [0, 64], sizes = [8, 32], strides = [1, 1]} : vector<8x128xf32> to vector<8x32xf32>
    %325 = vector.extract_strided_slice %320 {offsets = [0, 96], sizes = [8, 32], strides = [1, 1]} : vector<8x128xf32> to vector<8x32xf32>
    %326 = arith.mulf %323, %268 : vector<8x32xf32>
    %327 = arith.mulf %322, %324 : vector<8x32xf32>
    %328 = arith.addf %326, %327 : vector<8x32xf32>
    %329 = math.tanh %328 : vector<8x32xf32>
    %330 = arith.mulf %325, %329 : vector<8x32xf32>
    %cst_48 = arith.constant dense<0.000000e+00> : vector<8x256xf32>
    %331 = tpu.matmul %330, %6, %cst_48 {dimension_numbers = #tpu.dot_dimension_numbers<[1], [0], [0], [1], [0, 0, 1, 1], [], []>} : vector<8x32xf32>, vector<32x256xf32>, vector<8x256xf32> -> vector<8x256xf32>
    %332 = vector.extract_strided_slice %331 {offsets = [0, 0], sizes = [8, 128], strides = [1, 1]} : vector<8x256xf32> to vector<8x128xf32>
    %333 = vector.extract_strided_slice %331 {offsets = [0, 128], sizes = [8, 128], strides = [1, 1]} : vector<8x256xf32> to vector<8x128xf32>
    %334 = arith.addf %273, %293 : vector<8x128xf32>
    %335 = vector.broadcast %9 : vector<1x128xf32> to vector<8x128xf32>
    %336 = arith.addf %334, %335 : vector<8x128xf32>
    %337 = arith.negf %336 : vector<8x128xf32>
    %338 = math.exp %337 : vector<8x128xf32>
    %cst_49 = arith.constant 1.000000e+00 : f32
    %339 = vector.broadcast %cst_49 : f32 to vector<8x128xf32>
    %340 = arith.addf %339, %338 : vector<8x128xf32>
    %341 = arith.divf %339, %340 : vector<8x128xf32>
    %342 = math.tanh %336 : vector<8x128xf32>
    %343 = vector.extract_strided_slice %341 {offsets = [0, 0], sizes = [8, 32], strides = [1, 1]} : vector<8x128xf32> to vector<8x32xf32>
    %344 = vector.extract_strided_slice %341 {offsets = [0, 32], sizes = [8, 32], strides = [1, 1]} : vector<8x128xf32> to vector<8x32xf32>
    %345 = vector.extract_strided_slice %342 {offsets = [0, 64], sizes = [8, 32], strides = [1, 1]} : vector<8x128xf32> to vector<8x32xf32>
    %346 = vector.extract_strided_slice %341 {offsets = [0, 96], sizes = [8, 32], strides = [1, 1]} : vector<8x128xf32> to vector<8x32xf32>
    %347 = arith.mulf %344, %289 : vector<8x32xf32>
    %348 = arith.mulf %343, %345 : vector<8x32xf32>
    %349 = arith.addf %347, %348 : vector<8x32xf32>
    %350 = math.tanh %349 : vector<8x32xf32>
    %351 = arith.mulf %346, %350 : vector<8x32xf32>
    %cst_50 = arith.constant dense<0.000000e+00> : vector<8x256xf32>
    %352 = tpu.matmul %351, %7, %cst_50 {dimension_numbers = #tpu.dot_dimension_numbers<[1], [0], [0], [1], [0, 0, 1, 1], [], []>} : vector<8x32xf32>, vector<32x256xf32>, vector<8x256xf32> -> vector<8x256xf32>
    %353 = vector.extract_strided_slice %352 {offsets = [0, 0], sizes = [8, 128], strides = [1, 1]} : vector<8x256xf32> to vector<8x128xf32>
    %354 = vector.extract_strided_slice %352 {offsets = [0, 128], sizes = [8, 128], strides = [1, 1]} : vector<8x256xf32> to vector<8x128xf32>
    %355 = arith.addf %294, %313 : vector<8x128xf32>
    %356 = vector.broadcast %10 : vector<1x128xf32> to vector<8x128xf32>
    %357 = arith.addf %355, %356 : vector<8x128xf32>
    %358 = arith.negf %357 : vector<8x128xf32>
    %359 = math.exp %358 : vector<8x128xf32>
    %cst_51 = arith.constant 1.000000e+00 : f32
    %360 = vector.broadcast %cst_51 : f32 to vector<8x128xf32>
    %361 = arith.addf %360, %359 : vector<8x128xf32>
    %362 = arith.divf %360, %361 : vector<8x128xf32>
    %363 = math.tanh %357 : vector<8x128xf32>
    %364 = vector.extract_strided_slice %362 {offsets = [0, 0], sizes = [8, 32], strides = [1, 1]} : vector<8x128xf32> to vector<8x32xf32>
    %365 = vector.extract_strided_slice %362 {offsets = [0, 32], sizes = [8, 32], strides = [1, 1]} : vector<8x128xf32> to vector<8x32xf32>
    %366 = vector.extract_strided_slice %363 {offsets = [0, 64], sizes = [8, 32], strides = [1, 1]} : vector<8x128xf32> to vector<8x32xf32>
    %367 = vector.extract_strided_slice %362 {offsets = [0, 96], sizes = [8, 32], strides = [1, 1]} : vector<8x128xf32> to vector<8x32xf32>
    %368 = arith.mulf %365, %310 : vector<8x32xf32>
    %369 = arith.mulf %364, %366 : vector<8x32xf32>
    %370 = arith.addf %368, %369 : vector<8x32xf32>
    %371 = math.tanh %370 : vector<8x32xf32>
    %372 = arith.mulf %367, %371 : vector<8x32xf32>
    %cst_52 = arith.constant dense<0.000000e+00> : vector<8x128xf32>
    %373 = tpu.matmul %372, %8, %cst_52 {dimension_numbers = #tpu.dot_dimension_numbers<[1], [0], [0], [1], [0, 0, 1, 1], [], []>} : vector<8x32xf32>, vector<32x128xf32>, vector<8x128xf32> -> vector<8x128xf32>
    %374 = vector.extract_strided_slice %5 {offsets = [56, 0], sizes = [8, 128], strides = [1, 1]} : vector<64x128xf32> to vector<8x128xf32>
    %375 = arith.addf %374, %332 : vector<8x128xf32>
    %376 = arith.negf %375 : vector<8x128xf32>
    %377 = math.exp %376 : vector<8x128xf32>
    %cst_53 = arith.constant 1.000000e+00 : f32
    %378 = vector.broadcast %cst_53 : f32 to vector<8x128xf32>
    %379 = arith.addf %378, %377 : vector<8x128xf32>
    %380 = arith.divf %378, %379 : vector<8x128xf32>
    %381 = math.tanh %375 : vector<8x128xf32>
    %382 = vector.extract_strided_slice %380 {offsets = [0, 0], sizes = [8, 32], strides = [1, 1]} : vector<8x128xf32> to vector<8x32xf32>
    %383 = vector.extract_strided_slice %380 {offsets = [0, 32], sizes = [8, 32], strides = [1, 1]} : vector<8x128xf32> to vector<8x32xf32>
    %384 = vector.extract_strided_slice %381 {offsets = [0, 64], sizes = [8, 32], strides = [1, 1]} : vector<8x128xf32> to vector<8x32xf32>
    %385 = vector.extract_strided_slice %380 {offsets = [0, 96], sizes = [8, 32], strides = [1, 1]} : vector<8x128xf32> to vector<8x32xf32>
    %386 = arith.mulf %383, %328 : vector<8x32xf32>
    %387 = arith.mulf %382, %384 : vector<8x32xf32>
    %388 = arith.addf %386, %387 : vector<8x32xf32>
    %389 = math.tanh %388 : vector<8x32xf32>
    %390 = arith.mulf %385, %389 : vector<8x32xf32>
    %cst_54 = arith.constant dense<0.000000e+00> : vector<8x256xf32>
    %391 = tpu.matmul %390, %6, %cst_54 {dimension_numbers = #tpu.dot_dimension_numbers<[1], [0], [0], [1], [0, 0, 1, 1], [], []>} : vector<8x32xf32>, vector<32x256xf32>, vector<8x256xf32> -> vector<8x256xf32>
    %392 = vector.extract_strided_slice %391 {offsets = [0, 128], sizes = [8, 128], strides = [1, 1]} : vector<8x256xf32> to vector<8x128xf32>
    %393 = arith.addf %333, %353 : vector<8x128xf32>
    %394 = vector.broadcast %9 : vector<1x128xf32> to vector<8x128xf32>
    %395 = arith.addf %393, %394 : vector<8x128xf32>
    %396 = arith.negf %395 : vector<8x128xf32>
    %397 = math.exp %396 : vector<8x128xf32>
    %cst_55 = arith.constant 1.000000e+00 : f32
    %398 = vector.broadcast %cst_55 : f32 to vector<8x128xf32>
    %399 = arith.addf %398, %397 : vector<8x128xf32>
    %400 = arith.divf %398, %399 : vector<8x128xf32>
    %401 = math.tanh %395 : vector<8x128xf32>
    %402 = vector.extract_strided_slice %400 {offsets = [0, 0], sizes = [8, 32], strides = [1, 1]} : vector<8x128xf32> to vector<8x32xf32>
    %403 = vector.extract_strided_slice %400 {offsets = [0, 32], sizes = [8, 32], strides = [1, 1]} : vector<8x128xf32> to vector<8x32xf32>
    %404 = vector.extract_strided_slice %401 {offsets = [0, 64], sizes = [8, 32], strides = [1, 1]} : vector<8x128xf32> to vector<8x32xf32>
    %405 = vector.extract_strided_slice %400 {offsets = [0, 96], sizes = [8, 32], strides = [1, 1]} : vector<8x128xf32> to vector<8x32xf32>
    %406 = arith.mulf %403, %349 : vector<8x32xf32>
    %407 = arith.mulf %402, %404 : vector<8x32xf32>
    %408 = arith.addf %406, %407 : vector<8x32xf32>
    %409 = math.tanh %408 : vector<8x32xf32>
    %410 = arith.mulf %405, %409 : vector<8x32xf32>
    %cst_56 = arith.constant dense<0.000000e+00> : vector<8x256xf32>
    %411 = tpu.matmul %410, %7, %cst_56 {dimension_numbers = #tpu.dot_dimension_numbers<[1], [0], [0], [1], [0, 0, 1, 1], [], []>} : vector<8x32xf32>, vector<32x256xf32>, vector<8x256xf32> -> vector<8x256xf32>
    %412 = vector.extract_strided_slice %411 {offsets = [0, 0], sizes = [8, 128], strides = [1, 1]} : vector<8x256xf32> to vector<8x128xf32>
    %413 = vector.extract_strided_slice %411 {offsets = [0, 128], sizes = [8, 128], strides = [1, 1]} : vector<8x256xf32> to vector<8x128xf32>
    %414 = arith.addf %354, %373 : vector<8x128xf32>
    %415 = vector.broadcast %10 : vector<1x128xf32> to vector<8x128xf32>
    %416 = arith.addf %414, %415 : vector<8x128xf32>
    %417 = arith.negf %416 : vector<8x128xf32>
    %418 = math.exp %417 : vector<8x128xf32>
    %cst_57 = arith.constant 1.000000e+00 : f32
    %419 = vector.broadcast %cst_57 : f32 to vector<8x128xf32>
    %420 = arith.addf %419, %418 : vector<8x128xf32>
    %421 = arith.divf %419, %420 : vector<8x128xf32>
    %422 = math.tanh %416 : vector<8x128xf32>
    %423 = vector.extract_strided_slice %421 {offsets = [0, 0], sizes = [8, 32], strides = [1, 1]} : vector<8x128xf32> to vector<8x32xf32>
    %424 = vector.extract_strided_slice %421 {offsets = [0, 32], sizes = [8, 32], strides = [1, 1]} : vector<8x128xf32> to vector<8x32xf32>
    %425 = vector.extract_strided_slice %422 {offsets = [0, 64], sizes = [8, 32], strides = [1, 1]} : vector<8x128xf32> to vector<8x32xf32>
    %426 = vector.extract_strided_slice %421 {offsets = [0, 96], sizes = [8, 32], strides = [1, 1]} : vector<8x128xf32> to vector<8x32xf32>
    %427 = arith.mulf %424, %370 : vector<8x32xf32>
    %428 = arith.mulf %423, %425 : vector<8x32xf32>
    %429 = arith.addf %427, %428 : vector<8x32xf32>
    %430 = math.tanh %429 : vector<8x32xf32>
    %431 = arith.mulf %426, %430 : vector<8x32xf32>
    %cst_58 = arith.constant dense<0.000000e+00> : vector<8x128xf32>
    %432 = tpu.matmul %431, %8, %cst_58 {dimension_numbers = #tpu.dot_dimension_numbers<[1], [0], [0], [1], [0, 0, 1, 1], [], []>} : vector<8x32xf32>, vector<32x128xf32>, vector<8x128xf32> -> vector<8x128xf32>
    %433 = arith.addf %392, %412 : vector<8x128xf32>
    %434 = vector.broadcast %9 : vector<1x128xf32> to vector<8x128xf32>
    %435 = arith.addf %433, %434 : vector<8x128xf32>
    %436 = arith.negf %435 : vector<8x128xf32>
    %437 = math.exp %436 : vector<8x128xf32>
    %cst_59 = arith.constant 1.000000e+00 : f32
    %438 = vector.broadcast %cst_59 : f32 to vector<8x128xf32>
    %439 = arith.addf %438, %437 : vector<8x128xf32>
    %440 = arith.divf %438, %439 : vector<8x128xf32>
    %441 = math.tanh %435 : vector<8x128xf32>
    %442 = vector.extract_strided_slice %440 {offsets = [0, 0], sizes = [8, 32], strides = [1, 1]} : vector<8x128xf32> to vector<8x32xf32>
    %443 = vector.extract_strided_slice %440 {offsets = [0, 32], sizes = [8, 32], strides = [1, 1]} : vector<8x128xf32> to vector<8x32xf32>
    %444 = vector.extract_strided_slice %441 {offsets = [0, 64], sizes = [8, 32], strides = [1, 1]} : vector<8x128xf32> to vector<8x32xf32>
    %445 = vector.extract_strided_slice %440 {offsets = [0, 96], sizes = [8, 32], strides = [1, 1]} : vector<8x128xf32> to vector<8x32xf32>
    %446 = arith.mulf %443, %408 : vector<8x32xf32>
    %447 = arith.mulf %442, %444 : vector<8x32xf32>
    %448 = arith.addf %446, %447 : vector<8x32xf32>
    %449 = math.tanh %448 : vector<8x32xf32>
    %450 = arith.mulf %445, %449 : vector<8x32xf32>
    %cst_60 = arith.constant dense<0.000000e+00> : vector<8x256xf32>
    %451 = tpu.matmul %450, %7, %cst_60 {dimension_numbers = #tpu.dot_dimension_numbers<[1], [0], [0], [1], [0, 0, 1, 1], [], []>} : vector<8x32xf32>, vector<32x256xf32>, vector<8x256xf32> -> vector<8x256xf32>
    %452 = vector.extract_strided_slice %451 {offsets = [0, 128], sizes = [8, 128], strides = [1, 1]} : vector<8x256xf32> to vector<8x128xf32>
    %453 = arith.addf %413, %432 : vector<8x128xf32>
    %454 = vector.broadcast %10 : vector<1x128xf32> to vector<8x128xf32>
    %455 = arith.addf %453, %454 : vector<8x128xf32>
    %456 = arith.negf %455 : vector<8x128xf32>
    %457 = math.exp %456 : vector<8x128xf32>
    %cst_61 = arith.constant 1.000000e+00 : f32
    %458 = vector.broadcast %cst_61 : f32 to vector<8x128xf32>
    %459 = arith.addf %458, %457 : vector<8x128xf32>
    %460 = arith.divf %458, %459 : vector<8x128xf32>
    %461 = math.tanh %455 : vector<8x128xf32>
    %462 = vector.extract_strided_slice %460 {offsets = [0, 0], sizes = [8, 32], strides = [1, 1]} : vector<8x128xf32> to vector<8x32xf32>
    %463 = vector.extract_strided_slice %460 {offsets = [0, 32], sizes = [8, 32], strides = [1, 1]} : vector<8x128xf32> to vector<8x32xf32>
    %464 = vector.extract_strided_slice %461 {offsets = [0, 64], sizes = [8, 32], strides = [1, 1]} : vector<8x128xf32> to vector<8x32xf32>
    %465 = vector.extract_strided_slice %460 {offsets = [0, 96], sizes = [8, 32], strides = [1, 1]} : vector<8x128xf32> to vector<8x32xf32>
    %466 = arith.mulf %463, %429 : vector<8x32xf32>
    %467 = arith.mulf %462, %464 : vector<8x32xf32>
    %468 = arith.addf %466, %467 : vector<8x32xf32>
    %469 = math.tanh %468 : vector<8x32xf32>
    %470 = arith.mulf %465, %469 : vector<8x32xf32>
    %cst_62 = arith.constant dense<0.000000e+00> : vector<8x128xf32>
    %471 = tpu.matmul %470, %8, %cst_62 {dimension_numbers = #tpu.dot_dimension_numbers<[1], [0], [0], [1], [0, 0, 1, 1], [], []>} : vector<8x32xf32>, vector<32x128xf32>, vector<8x128xf32> -> vector<8x128xf32>
    %472 = arith.addf %452, %471 : vector<8x128xf32>
    %473 = vector.broadcast %10 : vector<1x128xf32> to vector<8x128xf32>
    %474 = arith.addf %472, %473 : vector<8x128xf32>
    %475 = arith.negf %474 : vector<8x128xf32>
    %476 = math.exp %475 : vector<8x128xf32>
    %cst_63 = arith.constant 1.000000e+00 : f32
    %477 = vector.broadcast %cst_63 : f32 to vector<8x128xf32>
    %478 = arith.addf %477, %476 : vector<8x128xf32>
    %479 = arith.divf %477, %478 : vector<8x128xf32>
    %480 = math.tanh %474 : vector<8x128xf32>
    %481 = vector.extract_strided_slice %479 {offsets = [0, 0], sizes = [8, 32], strides = [1, 1]} : vector<8x128xf32> to vector<8x32xf32>
    %482 = vector.extract_strided_slice %479 {offsets = [0, 32], sizes = [8, 32], strides = [1, 1]} : vector<8x128xf32> to vector<8x32xf32>
    %483 = vector.extract_strided_slice %480 {offsets = [0, 64], sizes = [8, 32], strides = [1, 1]} : vector<8x128xf32> to vector<8x32xf32>
    %484 = vector.extract_strided_slice %479 {offsets = [0, 96], sizes = [8, 32], strides = [1, 1]} : vector<8x128xf32> to vector<8x32xf32>
    %485 = arith.mulf %482, %468 : vector<8x32xf32>
    %486 = arith.mulf %481, %483 : vector<8x32xf32>
    %487 = arith.addf %485, %486 : vector<8x32xf32>
    %488 = math.tanh %487 : vector<8x32xf32>
    %489 = arith.mulf %484, %488 : vector<8x32xf32>
    %c0_64 = arith.constant 0 : index
    %c0_65 = arith.constant 0 : index
    %490 = vector.load %arg8[%c0_64, %c0_65] : memref<1x32xf32, #tpu.memory_space<vmem>>, vector<1x32xf32>
    %491 = vector.broadcast %490 : vector<1x32xf32> to vector<8x32xf32>
    %492 = arith.mulf %489, %491 : vector<8x32xf32>
    %cst_66 = arith.constant dense<0.000000e+00> : vector<8xf32>
    %493 = vector.multi_reduction <add>, %492, %cst_66 [1] : vector<8x32xf32> to vector<8xf32>
    %494 = vector.shape_cast %493 : vector<8xf32> to vector<8x1xf32>
    %c0_67 = arith.constant 0 : index
    %c0_68 = arith.constant 0 : index
    %495 = vector.load %arg9[%c0_67, %c0_68] : memref<1x1xf32, #tpu.memory_space<vmem>>, vector<1x1xf32>
    %496 = vector.broadcast %495 : vector<1x1xf32> to vector<8x1xf32>
    %497 = arith.addf %494, %496 : vector<8x1xf32>
    %cst_69 = arith.constant 0.000000e+00 : f32
    %498 = vector.broadcast %cst_69 : f32 to vector<8x1xf32>
    %499 = arith.maximumf %497, %498 : vector<8x1xf32>
    %c0_70 = arith.constant 0 : index
    %c0_71 = arith.constant 0 : index
    %500 = vector.load %arg10[%c0_70, %c0_71] : memref<8x1xf32, #tpu.memory_space<vmem>>, vector<8x1xf32>
    tpu.vector_store %arg10[%c0_70, %c0_71], %499 {strides = array<i32>} : memref<8x1xf32, #tpu.memory_space<vmem>>, vector<8x1xf32>,
    return
  }
}

</mosaic_0001>

<llo_original>
// kernel: lstm_model_forward.1
$region0: #{lstm_model_forward.1}
  #allocation0 [shape = 'u32[]', space=smem, size = 0x4, offset = 0x4, fixed_abs, tag = 'smem constant byte address 0x4 - core index']
  #allocation1 [shape = 'u32[72,128]{1,0:T(1,128)}', space=vmem, size = 0x9000, scoped, tag = 'internal scratch']
  #allocation2 [shape = 'f32[1,1]{1,0:T(1,128)S(1)}', space=vmem, size = 0x200, scoped, tag = 'scoped memory for lstm_model_forward.1']
  %s0 = inlined_call_operand.vmem [shape: f32[64,16], index: 0, kind: input, shape index: {}]
  %s1 = inlined_call_operand.hbm [shape: f32[16,128], index: 1, kind: input, shape index: {}]
  %s2 = inlined_call_operand.vmem [shape: f32[1,128], index: 2, kind: input, shape index: {}]
  %s3 = inlined_call_operand.vmem [shape: f32[32,256], index: 3, kind: input, shape index: {}]
  %s4 = inlined_call_operand.vmem [shape: f32[1,128], index: 4, kind: input, shape index: {}]
  %s5 = inlined_call_operand.vmem [shape: f32[32,256], index: 5, kind: input, shape index: {}]
  %s6 = inlined_call_operand.vmem [shape: f32[1,128], index: 6, kind: input, shape index: {}]
  %s7 = inlined_call_operand.hbm [shape: f32[32,128], index: 7, kind: input, shape index: {}]
  %s8 = inlined_call_operand.vmem [shape: f32[1,32], index: 8, kind: input, shape index: {}]
  %s9 = inlined_call_operand.<no memory space> [shape: f32[1,1], index: 9, kind: input, shape index: {}]
  %s10 = inlined_call_operand.vmem [shape: f32[8,1], index: 10, kind: output, shape index: {}]
  %s11 = sld [smem:[#allocation0]]
  $region58: #{lstm_model_forward.1} parent=0
    _
  %s13 = ssub.s32 1, %s11
  %s14 = scalar_select 0, %s13, %s11
  %v15 = vstv %s9
  %16 = vst [vmem:[#allocation2] sm:$0x1] %v15
  $region1: #{lstm_model_forward.1} parent=0
    #allocation3 [shape = 'u8[8192]{0}', space=vmem, size = 0x2000, scoped, tag = 'input window, operand 1, single buffered']
    #allocation4 [shape = 's32[1]{0}', space=sflag, size = 0x4, scoped, tag = 'scoped memory for lstm_model_forward.1']
    #allocation5 [shape = 'u8[16384]{0}', space=vmem, size = 0x4000, scoped, tag = 'input window, operand 7, single buffered']
    #allocation6 [shape = 's32[1]{0}', space=sflag, size = 0x4, scoped, tag = 'scoped memory for lstm_model_forward.1']
    %17 = vsyncpa [#allocation4], 0
    %18 = vsyncpa [#allocation6], 0
    // Predicated region
    $region2: #{lstm_model_forward.1} parent=1 // pred_check
      _
    $region3: #{lstm_model_forward.1} parent=1 // pred_check_branch
      %20 = sbr.rel (0) target = $region5
    $region4: #{lstm_model_forward.1} parent=1 // pred_region
      _
    $region5: #{lstm_model_forward.1} parent=1 // pred_fallthru
      _
    // Predicated region
    $region6: #{lstm_model_forward.1} parent=1 // pred_check
      _
    $region7: #{lstm_model_forward.1} parent=1 // pred_check_branch
      %22 = sbr.rel (0) target = $region9
    $region8: #{lstm_model_forward.1} parent=1 // pred_region
      %24 = vsyncadd [#allocation4], 0
      %s25 = sshll.u32 %s1, 4
      %s26 = int_to_ptr.hbm [resolvable:$true] %s25
      %s27 = sshll.u32 [#allocation3], 4
      %s28 = int_to_ptr.vmem [resolvable:$true] %s27
      %33 = dma.hbm_to_vmem [thread:$0]  %s26, 256, %s28, [#allocation4], 128, 128, 8
    $region9: #{lstm_model_forward.1} parent=1 // pred_fallthru
      _
    // Predicated region
    $region10: #{lstm_model_forward.1} parent=1 // pred_check
      _
    $region11: #{lstm_model_forward.1} parent=1 // pred_check_branch
      %35 = sbr.rel (0) target = $region13
    $region12: #{lstm_model_forward.1} parent=1 // pred_region
      _
    $region13: #{lstm_model_forward.1} parent=1 // pred_fallthru
      _
    // Predicated region
    $region14: #{lstm_model_forward.1} parent=1 // pred_check
      _
    $region15: #{lstm_model_forward.1} parent=1 // pred_check_branch
      %37 = sbr.rel (0) target = $region17
    $region16: #{lstm_model_forward.1} parent=1 // pred_region
      _
    $region17: #{lstm_model_forward.1} parent=1 // pred_fallthru
      _
    // Predicated region
    $region18: #{lstm_model_forward.1} parent=1 // pred_check
      _
    $region19: #{lstm_model_forward.1} parent=1 // pred_check_branch
      %39 = sbr.rel (0) target = $region21
    $region20: #{lstm_model_forward.1} parent=1 // pred_region
      _
    $region21: #{lstm_model_forward.1} parent=1 // pred_fallthru
      _
    // Predicated region
    $region22: #{lstm_model_forward.1} parent=1 // pred_check
      _
    $region23: #{lstm_model_forward.1} parent=1 // pred_check_branch
      %41 = sbr.rel (0) target = $region25
    $region24: #{lstm_model_forward.1} parent=1 // pred_region
      _
    $region25: #{lstm_model_forward.1} parent=1 // pred_fallthru
      _
    // Predicated region
    $region26: #{lstm_model_forward.1} parent=1 // pred_check
      _
    $region27: #{lstm_model_forward.1} parent=1 // pred_check_branch
      %43 = sbr.rel (0) target = $region29
    $region28: #{lstm_model_forward.1} parent=1 // pred_region
      _
    $region29: #{lstm_model_forward.1} parent=1 // pred_fallthru
      _
    // Predicated region
    $region30: #{lstm_model_forward.1} parent=1 // pred_check
      _
    $region31: #{lstm_model_forward.1} parent=1 // pred_check_branch
      %45 = sbr.rel (0) target = $region33
    $region32: #{lstm_model_forward.1} parent=1 // pred_region
      %47 = vsyncadd [#allocation6], 0
      %s48 = sshll.u32 %s7, 4
      %s49 = int_to_ptr.hbm [resolvable:$true] %s48
      %s50 = sshll.u32 [#allocation5], 4
      %s51 = int_to_ptr.vmem [resolvable:$true] %s50
      %56 = dma.hbm_to_vmem [thread:$0]  %s49, 512, %s51, [#allocation6], 128, 128, 8
    $region33: #{lstm_model_forward.1} parent=1 // pred_fallthru
      _
    // Predicated region
    $region34: #{lstm_model_forward.1} parent=1 // pred_check
      _
    $region35: #{lstm_model_forward.1} parent=1 // pred_check_branch
      %58 = sbr.rel (0) target = $region37
    $region36: #{lstm_model_forward.1} parent=1 // pred_region
      _
    $region37: #{lstm_model_forward.1} parent=1 // pred_fallthru
      _
    // Predicated region
    $region38: #{lstm_model_forward.1} parent=1 // pred_check
      _
    $region39: #{lstm_model_forward.1} parent=1 // pred_check_branch
      %60 = sbr.rel (0) target = $region41
    $region40: #{lstm_model_forward.1} parent=1 // pred_region
      _
    $region41: #{lstm_model_forward.1} parent=1 // pred_fallthru
      _
    // Predicated region
    $region42: #{lstm_model_forward.1} parent=1 // pred_check
      _
    $region43: #{lstm_model_forward.1} parent=1 // pred_check_branch
      %62 = sbr.rel (0) target = $region45
    $region44: #{lstm_model_forward.1} parent=1 // pred_region
      %64 = dma.done [#allocation4], 256
    $region45: #{lstm_model_forward.1} parent=1 // pred_fallthru
      _
    // Predicated region
    $region46: #{lstm_model_forward.1} parent=1 // pred_check
      _
    $region47: #{lstm_model_forward.1} parent=1 // pred_check_branch
      %66 = sbr.rel (0) target = $region49
    $region48: #{lstm_model_forward.1} parent=1 // pred_region
      %68 = dma.done [#allocation6], 512
    $region49: #{lstm_model_forward.1} parent=1 // pred_fallthru
      _
    %v69 = vld [vmem:[%s0] sm:$0xff]
    %v70 = vld [vmem:[%s0 + $0x8] sm:$0xff]
    %v71 = vld [vmem:[%s0 + $0x10] sm:$0xff]
    %v72 = vld [vmem:[%s0 + $0x18] sm:$0xff]
    %v73 = vld [vmem:[%s0 + $0x20] sm:$0xff]
    %v74 = vld [vmem:[%s0 + $0x28] sm:$0xff]
    %v75 = vld [vmem:[%s0 + $0x30] sm:$0xff]
    %v76 = vld [vmem:[%s0 + $0x38] sm:$0xff]
    %v77 = vld [vmem:[#allocation3] sm:$0xff]
    %v78 = vld [vmem:[#allocation3 + $0x8] sm:$0xff]
    %v79 = vld [vmem:[%s2] sm:$0x1]
    %v81 = vperm.slane %v79, 0
    %vm83 = vcmask 130048
    %v85 = vsel %vm83, %v69, 0
    %v88 = vsel %vm83, %v70, 0
    %v91 = vsel %vm83, %v71, 0
    %v94 = vsel %vm83, %v72, 0
    %v97 = vsel %vm83, %v73, 0
    %v100 = vsel %vm83, %v74, 0
    %v103 = vsel %vm83, %v75, 0
    %v106 = vsel %vm83, %v76, 0
    %108 = vmatpush.msra.mxu0 0.0
    %109 = vmatpush.msra.mxu0 0.0
    %110 = vmatpush.msra.mxu0 0.0
    %111 = vmatpush.msra.mxu0 0.0
    %112 = vmatpush.msra.mxu0 0.0
    %113 = vmatpush.msra.mxu0 0.0
    %114 = vmatpush.msra.mxu0 0.0
    %115 = vmatpush.msra.mxu0 0.0
    %116 = vmatpush.msra.mxu0 0.0
    %117 = vmatpush.msra.mxu0 0.0
    %118 = vmatpush.msra.mxu0 0.0
    %119 = vmatpush.msra.mxu0 0.0
    %120 = vmatpush.msra.mxu0 0.0
    %121 = vmatpush.msra.mxu0 0.0
    %122 = vmatpush.msra.mxu0 %v78
    %123 = vmatpush.msra.mxu0 %v77
    %124 = vmatmul.f32.gmra.mxu0 %v85
    %v125 = vpop.f32.mrf.mxu0
    %v126 = vadd.f32 %v81, %v125
    %127 = vmatmul.f32.gmra.mxu0 %v88
    %v128 = vpop.f32.mrf.mxu0
    %v129 = vadd.f32 %v81, %v128
    %130 = vmatmul.f32.gmra.mxu0 %v91
    %v131 = vpop.f32.mrf.mxu0
    %v132 = vadd.f32 %v81, %v131
    %133 = vmatmul.f32.gmra.mxu0 %v94
    %v134 = vpop.f32.mrf.mxu0
    %v135 = vadd.f32 %v81, %v134
    %136 = vmatmul.f32.gmra.mxu0 %v97
    %v137 = vpop.f32.mrf.mxu0
    %v138 = vadd.f32 %v81, %v137
    %139 = vmatmul.f32.gmra.mxu0 %v100
    %v140 = vpop.f32.mrf.mxu0
    %v141 = vadd.f32 %v81, %v140
    %142 = vmatmul.f32.gmra.mxu0 %v103
    %v143 = vpop.f32.mrf.mxu0
    %v144 = vadd.f32 %v81, %v143
    %145 = vmatmul.f32.gmra.mxu0 %v106
    %v146 = vpop.f32.mrf.mxu0
    %v147 = vadd.f32 %v81, %v146
    %148 = vdwg.mxu0
    %v149 = vld [vmem:[%s3] sm:$0xff]
    %v150 = vld [vmem:[%s3 + $0x8] sm:$0xff]
    %v151 = vld [vmem:[%s3 + $0x10] sm:$0xff]
    %v152 = vld [vmem:[%s3 + $0x18] sm:$0xff]
    %v153 = vld [vmem:[%s3 + $0x20] sm:$0xff]
    %v154 = vld [vmem:[%s3 + $0x28] sm:$0xff]
    %v155 = vld [vmem:[%s3 + $0x30] sm:$0xff]
    %v156 = vld [vmem:[%s3 + $0x38] sm:$0xff]
    %v157 = vld [vmem:[%s5] sm:$0xff]
    %v158 = vld [vmem:[%s5 + $0x8] sm:$0xff]
    %v159 = vld [vmem:[%s5 + $0x10] sm:$0xff]
    %v160 = vld [vmem:[%s5 + $0x18] sm:$0xff]
    %v161 = vld [vmem:[%s5 + $0x20] sm:$0xff]
    %v162 = vld [vmem:[%s5 + $0x28] sm:$0xff]
    %v163 = vld [vmem:[%s5 + $0x30] sm:$0xff]
    %v164 = vld [vmem:[%s5 + $0x38] sm:$0xff]
    %v165 = vld [vmem:[#allocation5] sm:$0xff]
    %v166 = vld [vmem:[#allocation5 + $0x8] sm:$0xff]
    %v167 = vld [vmem:[#allocation5 + $0x10] sm:$0xff]
    %v168 = vld [vmem:[#allocation5 + $0x18] sm:$0xff]
    %v169 = vld [vmem:[%s4] sm:$0x1]
    %v170 = vld [vmem:[%s6] sm:$0x1]
    %v171 = vadd.f32 %v126, 0.0
    %v172 = vxor.u32 %v171, 2147483648
    %v173 = vmul.f32 %v172, 1.442695
    %v174 = vpow.pop %v173
    %v175 = vadd.f32 %v174, 1.0
    %v176 = vrcp.pop %v175
    %v177 = vmul.f32 %v175, %v176
    %v178 = vsub.f32 1.0, %v177
    %v179 = vmul.f32 %v176, %v178
    %v180 = vadd.f32 %v176, %v179
    %vm181 = vweird.f32 %v175
    %vm182 = vweird.f32 %v176
    %vm183 = vmor %vm181, %vm182
    %v184 = vsel %vm183, %v176, %v180
    %v185 = vand.u32 2147483647, %v175
    %vm186 = vcmp.eq.f32.partialorder %v185, 8.507059e+37
    %v187 = vand.u32 %v175, 2147483648
    %v188 = vor.u32 1.1754944e-38, %v187
    %v189 = vsel %vm186, %v188, %v184
    %v190 = vmul.f32 1.0, %v189
    %v191 = vtanh.pop %v171
    %v192 = vmul.f32 %v190, 0.0
    %194 = vrot.lane.b32.xlu0 %v191, 64
    %v195 = vpop.permute.xlu0 %194
    %v197 = vmul.f32 %v190, %v195
    %199 = vrot.lane.b32.xlu0 %v197, 32
    %v200 = vpop.permute.xlu0 %199
    %v202 = vadd.f32 %v192, %v200
    %v203 = vtanh.pop %v202
    %205 = vrot.lane.b32.xlu0 %v203, 64
    %v206 = vpop.permute.xlu0 %205
    %v208 = vmul.f32 %v190, %v206
    %210 = vrot.lane.b32.xlu0 %v208, 32
    %v211 = vpop.permute.xlu0 %210
    %vm212 = vcmask 261120
    %v213 = vsel %vm212, %v211, 0
    %215 = vmatpush.msra.mxu0 0.0
    %216 = vmatpush.msra.mxu0 0.0
    %217 = vmatpush.msra.mxu0 0.0
    %218 = vmatpush.msra.mxu0 0.0
    %219 = vmatpush.msra.mxu0 0.0
    %220 = vmatpush.msra.mxu0 0.0
    %221 = vmatpush.msra.mxu0 0.0
    %222 = vmatpush.msra.mxu0 0.0
    %223 = vmatpush.msra.mxu0 0.0
    %224 = vmatpush.msra.mxu0 0.0
    %225 = vmatpush.msra.mxu0 0.0
    %226 = vmatpush.msra.mxu0 0.0
    %227 = vmatpush.msra.mxu0 %v155
    %228 = vmatpush.msra.mxu0 %v153
    %229 = vmatpush.msra.mxu0 %v151
    %230 = vmatpush.msra.mxu0 %v149
    %231 = vmatmul.f32.gmra.mxu0 %v213
    %v232 = vpop.f32.mrf.mxu0
    %v233 = vadd.f32 0.0, %v232
    %234 = vdwg.mxu0
    %235 = vmatpush.msra.mxu0 0.0
    %236 = vmatpush.msra.mxu0 0.0
    %237 = vmatpush.msra.mxu0 0.0
    %238 = vmatpush.msra.mxu0 0.0
    %239 = vmatpush.msra.mxu0 0.0
    %240 = vmatpush.msra.mxu0 0.0
    %241 = vmatpush.msra.mxu0 0.0
    %242 = vmatpush.msra.mxu0 0.0
    %243 = vmatpush.msra.mxu0 0.0
    %244 = vmatpush.msra.mxu0 0.0
    %245 = vmatpush.msra.mxu0 0.0
    %246 = vmatpush.msra.mxu0 0.0
    %247 = vmatpush.msra.mxu0 %v156
    %248 = vmatpush.msra.mxu0 %v154
    %249 = vmatpush.msra.mxu0 %v152
    %250 = vmatpush.msra.mxu0 %v150
    %251 = vmatmul.f32.gmra.mxu0 %v213
    %v252 = vpop.f32.mrf.mxu0
    %v253 = vadd.f32 0.0, %v252
    %254 = vdwg.mxu0
    %v255 = vadd.f32 %v129, %v233
    %v256 = vxor.u32 %v255, 2147483648
    %v257 = vmul.f32 %v256, 1.442695
    %v258 = vpow.pop %v257
    %v259 = vadd.f32 %v258, 1.0
    %v260 = vrcp.pop %v259
    %v261 = vmul.f32 %v259, %v260
    %v262 = vsub.f32 1.0, %v261
    %v263 = vmul.f32 %v260, %v262
    %v264 = vadd.f32 %v260, %v263
    %vm265 = vweird.f32 %v259
    %vm266 = vweird.f32 %v260
    %vm267 = vmor %vm265, %vm266
    %v268 = vsel %vm267, %v260, %v264
    %v269 = vand.u32 2147483647, %v259
    %vm270 = vcmp.eq.f32.partialorder %v269, 8.507059e+37
    %v271 = vand.u32 %v259, 2147483648
    %v272 = vor.u32 1.1754944e-38, %v271
    %v273 = vsel %vm270, %v272, %v268
    %v274 = vmul.f32 1.0, %v273
    %v275 = vtanh.pop %v255
    %v276 = vmul.f32 %v274, %v202
    %278 = vrot.lane.b32.xlu0 %v275, 64
    %v279 = vpop.permute.xlu0 %278
    %v281 = vmul.f32 %v274, %v279
    %283 = vrot.lane.b32.xlu0 %v281, 32
    %v284 = vpop.permute.xlu0 %283
    %v286 = vadd.f32 %v276, %v284
    %v287 = vtanh.pop %v286
    %289 = vrot.lane.b32.xlu0 %v287, 64
    %v290 = vpop.permute.xlu0 %289
    %v292 = vmul.f32 %v274, %v290
    %294 = vrot.lane.b32.xlu0 %v292, 32
    %v295 = vpop.permute.xlu0 %294
    %v296 = vsel %vm212, %v295, 0
    %298 = vmatpush.msra.mxu0 0.0
    %299 = vmatpush.msra.mxu0 0.0
    %300 = vmatpush.msra.mxu0 0.0
    %301 = vmatpush.msra.mxu0 0.0
    %302 = vmatpush.msra.mxu0 0.0
    %303 = vmatpush.msra.mxu0 0.0
    %304 = vmatpush.msra.mxu0 0.0
    %305 = vmatpush.msra.mxu0 0.0
    %306 = vmatpush.msra.mxu0 0.0
    %307 = vmatpush.msra.mxu0 0.0
    %308 = vmatpush.msra.mxu0 0.0
    %309 = vmatpush.msra.mxu0 0.0
    %310 = vmatpush.msra.mxu0 %v155
    %311 = vmatpush.msra.mxu0 %v153
    %312 = vmatpush.msra.mxu0 %v151
    %313 = vmatpush.msra.mxu0 %v149
    %314 = vmatmul.f32.gmra.mxu0 %v296
    %v315 = vpop.f32.mrf.mxu0
    %v316 = vadd.f32 0.0, %v315
    %317 = vdwg.mxu0
    %318 = vmatpush.msra.mxu0 0.0
    %319 = vmatpush.msra.mxu0 0.0
    %320 = vmatpush.msra.mxu0 0.0
    %321 = vmatpush.msra.mxu0 0.0
    %322 = vmatpush.msra.mxu0 0.0
    %323 = vmatpush.msra.mxu0 0.0
    %324 = vmatpush.msra.mxu0 0.0
    %325 = vmatpush.msra.mxu0 0.0
    %326 = vmatpush.msra.mxu0 0.0
    %327 = vmatpush.msra.mxu0 0.0
    %328 = vmatpush.msra.mxu0 0.0
    %329 = vmatpush.msra.mxu0 0.0
    %330 = vmatpush.msra.mxu0 %v156
    %331 = vmatpush.msra.mxu0 %v154
    %332 = vmatpush.msra.mxu0 %v152
    %333 = vmatpush.msra.mxu0 %v150
    %334 = vmatmul.f32.gmra.mxu0 %v296
    %v335 = vpop.f32.mrf.mxu0
    %v336 = vadd.f32 0.0, %v335
    %337 = vdwg.mxu0
    %v338 = vadd.f32 %v253, 0.0
    %v340 = vperm.slane %v169, 0
    %v342 = vadd.f32 %v338, %v340
    %v343 = vxor.u32 %v342, 2147483648
    %v344 = vmul.f32 %v343, 1.442695
    %v345 = vpow.pop %v344
    %v346 = vadd.f32 %v345, 1.0
    %v347 = vrcp.pop %v346
    %v348 = vmul.f32 %v346, %v347
    %v349 = vsub.f32 1.0, %v348
    %v350 = vmul.f32 %v347, %v349
    %v351 = vadd.f32 %v347, %v350
    %vm352 = vweird.f32 %v346
    %vm353 = vweird.f32 %v347
    %vm354 = vmor %vm352, %vm353
    %v355 = vsel %vm354, %v347, %v351
    %v356 = vand.u32 2147483647, %v346
    %vm357 = vcmp.eq.f32.partialorder %v356, 8.507059e+37
    %v358 = vand.u32 %v346, 2147483648
    %v359 = vor.u32 1.1754944e-38, %v358
    %v360 = vsel %vm357, %v359, %v355
    %v361 = vmul.f32 1.0, %v360
    %v362 = vtanh.pop %v342
    %v363 = vmul.f32 %v361, 0.0
    %365 = vrot.lane.b32.xlu0 %v362, 64
    %v366 = vpop.permute.xlu0 %365
    %v368 = vmul.f32 %v361, %v366
    %370 = vrot.lane.b32.xlu0 %v368, 32
    %v371 = vpop.permute.xlu0 %370
    %v373 = vadd.f32 %v363, %v371
    %v374 = vtanh.pop %v373
    %376 = vrot.lane.b32.xlu0 %v374, 64
    %v377 = vpop.permute.xlu0 %376
    %v379 = vmul.f32 %v361, %v377
    %381 = vrot.lane.b32.xlu0 %v379, 32
    %v382 = vpop.permute.xlu0 %381
    %v383 = vsel %vm212, %v382, 0
    %385 = vmatpush.msra.mxu0 0.0
    %386 = vmatpush.msra.mxu0 0.0
    %387 = vmatpush.msra.mxu0 0.0
    %388 = vmatpush.msra.mxu0 0.0
    %389 = vmatpush.msra.mxu0 0.0
    %390 = vmatpush.msra.mxu0 0.0
    %391 = vmatpush.msra.mxu0 0.0
    %392 = vmatpush.msra.mxu0 0.0
    %393 = vmatpush.msra.mxu0 0.0
    %394 = vmatpush.msra.mxu0 0.0
    %395 = vmatpush.msra.mxu0 0.0
    %396 = vmatpush.msra.mxu0 0.0
    %397 = vmatpush.msra.mxu0 %v163
    %398 = vmatpush.msra.mxu0 %v161
    %399 = vmatpush.msra.mxu0 %v159
    %400 = vmatpush.msra.mxu0 %v157
    %401 = vmatmul.f32.gmra.mxu0 %v383
    %v402 = vpop.f32.mrf.mxu0
    %v403 = vadd.f32 0.0, %v402
    %404 = vdwg.mxu0
    %405 = vmatpush.msra.mxu0 0.0
    %406 = vmatpush.msra.mxu0 0.0
    %407 = vmatpush.msra.mxu0 0.0
    %408 = vmatpush.msra.mxu0 0.0
    %409 = vmatpush.msra.mxu0 0.0
    %410 = vmatpush.msra.mxu0 0.0
    %411 = vmatpush.msra.mxu0 0.0
    %412 = vmatpush.msra.mxu0 0.0
    %413 = vmatpush.msra.mxu0 0.0
    %414 = vmatpush.msra.mxu0 0.0
    %415 = vmatpush.msra.mxu0 0.0
    %416 = vmatpush.msra.mxu0 0.0
    %417 = vmatpush.msra.mxu0 %v164
    %418 = vmatpush.msra.mxu0 %v162
    %419 = vmatpush.msra.mxu0 %v160
    %420 = vmatpush.msra.mxu0 %v158
    %421 = vmatmul.f32.gmra.mxu0 %v383
    %v422 = vpop.f32.mrf.mxu0
    %v423 = vadd.f32 0.0, %v422
    %424 = vdwg.mxu0
    %v425 = vadd.f32 %v132, %v316
    %v426 = vxor.u32 %v425, 2147483648
    %v427 = vmul.f32 %v426, 1.442695
    %v428 = vpow.pop %v427
    %v429 = vadd.f32 %v428, 1.0
    %v430 = vrcp.pop %v429
    %v431 = vmul.f32 %v429, %v430
    %v432 = vsub.f32 1.0, %v431
    %v433 = vmul.f32 %v430, %v432
    %v434 = vadd.f32 %v430, %v433
    %vm435 = vweird.f32 %v429
    %vm436 = vweird.f32 %v430
    %vm437 = vmor %vm435, %vm436
    %v438 = vsel %vm437, %v430, %v434
    %v439 = vand.u32 2147483647, %v429
    %vm440 = vcmp.eq.f32.partialorder %v439, 8.507059e+37
    %v441 = vand.u32 %v429, 2147483648
    %v442 = vor.u32 1.1754944e-38, %v441
    %v443 = vsel %vm440, %v442, %v438
    %v444 = vmul.f32 1.0, %v443
    %v445 = vtanh.pop %v425
    %v446 = vmul.f32 %v444, %v286
    %448 = vrot.lane.b32.xlu0 %v445, 64
    %v449 = vpop.permute.xlu0 %448
    %v451 = vmul.f32 %v444, %v449
    %453 = vrot.lane.b32.xlu0 %v451, 32
    %v454 = vpop.permute.xlu0 %453
    %v456 = vadd.f32 %v446, %v454
    %v457 = vtanh.pop %v456
    %459 = vrot.lane.b32.xlu0 %v457, 64
    %v460 = vpop.permute.xlu0 %459
    %v462 = vmul.f32 %v444, %v460
    %464 = vrot.lane.b32.xlu0 %v462, 32
    %v465 = vpop.permute.xlu0 %464
    %v466 = vsel %vm212, %v465, 0
    %468 = vmatpush.msra.mxu0 0.0
    %469 = vmatpush.msra.mxu0 0.0
    %470 = vmatpush.msra.mxu0 0.0
    %471 = vmatpush.msra.mxu0 0.0
    %472 = vmatpush.msra.mxu0 0.0
    %473 = vmatpush.msra.mxu0 0.0
    %474 = vmatpush.msra.mxu0 0.0
    %475 = vmatpush.msra.mxu0 0.0
    %476 = vmatpush.msra.mxu0 0.0
    %477 = vmatpush.msra.mxu0 0.0
    %478 = vmatpush.msra.mxu0 0.0
    %479 = vmatpush.msra.mxu0 0.0
    %480 = vmatpush.msra.mxu0 %v155
    %481 = vmatpush.msra.mxu0 %v153
    %482 = vmatpush.msra.mxu0 %v151
    %483 = vmatpush.msra.mxu0 %v149
    %484 = vmatmul.f32.gmra.mxu0 %v466
    %v485 = vpop.f32.mrf.mxu0
    %v486 = vadd.f32 0.0, %v485
    %487 = vdwg.mxu0
    %488 = vmatpush.msra.mxu0 0.0
    %489 = vmatpush.msra.mxu0 0.0
    %490 = vmatpush.msra.mxu0 0.0
    %491 = vmatpush.msra.mxu0 0.0
    %492 = vmatpush.msra.mxu0 0.0
    %493 = vmatpush.msra.mxu0 0.0
    %494 = vmatpush.msra.mxu0 0.0
    %495 = vmatpush.msra.mxu0 0.0
    %496 = vmatpush.msra.mxu0 0.0
    %497 = vmatpush.msra.mxu0 0.0
    %498 = vmatpush.msra.mxu0 0.0
    %499 = vmatpush.msra.mxu0 0.0
    %500 = vmatpush.msra.mxu0 %v156
    %501 = vmatpush.msra.mxu0 %v154
    %502 = vmatpush.msra.mxu0 %v152
    %503 = vmatpush.msra.mxu0 %v150
    %504 = vmatmul.f32.gmra.mxu0 %v466
    %v505 = vpop.f32.mrf.mxu0
    %v506 = vadd.f32 0.0, %v505
    %507 = vdwg.mxu0
    %v508 = vadd.f32 %v336, %v403
    %v509 = vadd.f32 %v508, %v340
    %v510 = vxor.u32 %v509, 2147483648
    %v511 = vmul.f32 %v510, 1.442695
    %v512 = vpow.pop %v511
    %v513 = vadd.f32 %v512, 1.0
    %v514 = vrcp.pop %v513
    %v515 = vmul.f32 %v513, %v514
    %v516 = vsub.f32 1.0, %v515
    %v517 = vmul.f32 %v514, %v516
    %v518 = vadd.f32 %v514, %v517
    %vm519 = vweird.f32 %v513
    %vm520 = vweird.f32 %v514
    %vm521 = vmor %vm519, %vm520
    %v522 = vsel %vm521, %v514, %v518
    %v523 = vand.u32 2147483647, %v513
    %vm524 = vcmp.eq.f32.partialorder %v523, 8.507059e+37
    %v525 = vand.u32 %v513, 2147483648
    %v526 = vor.u32 1.1754944e-38, %v525
    %v527 = vsel %vm524, %v526, %v522
    %v528 = vmul.f32 1.0, %v527
    %v529 = vtanh.pop %v509
    %v530 = vmul.f32 %v528, %v373
    %532 = vrot.lane.b32.xlu0 %v529, 64
    %v533 = vpop.permute.xlu0 %532
    %v535 = vmul.f32 %v528, %v533
    %537 = vrot.lane.b32.xlu0 %v535, 32
    %v538 = vpop.permute.xlu0 %537
    %v540 = vadd.f32 %v530, %v538
    %v541 = vtanh.pop %v540
    %543 = vrot.lane.b32.xlu0 %v541, 64
    %v544 = vpop.permute.xlu0 %543
    %v546 = vmul.f32 %v528, %v544
    %548 = vrot.lane.b32.xlu0 %v546, 32
    %v549 = vpop.permute.xlu0 %548
    %v550 = vsel %vm212, %v549, 0
    %552 = vmatpush.msra.mxu0 0.0
    %553 = vmatpush.msra.mxu0 0.0
    %554 = vmatpush.msra.mxu0 0.0
    %555 = vmatpush.msra.mxu0 0.0
    %556 = vmatpush.msra.mxu0 0.0
    %557 = vmatpush.msra.mxu0 0.0
    %558 = vmatpush.msra.mxu0 0.0
    %559 = vmatpush.msra.mxu0 0.0
    %560 = vmatpush.msra.mxu0 0.0
    %561 = vmatpush.msra.mxu0 0.0
    %562 = vmatpush.msra.mxu0 0.0
    %563 = vmatpush.msra.mxu0 0.0
    %564 = vmatpush.msra.mxu0 %v163
    %565 = vmatpush.msra.mxu0 %v161
    %566 = vmatpush.msra.mxu0 %v159
    %567 = vmatpush.msra.mxu0 %v157
    %568 = vmatmul.f32.gmra.mxu0 %v550
    %v569 = vpop.f32.mrf.mxu0
    %v570 = vadd.f32 0.0, %v569
    %571 = vdwg.mxu0
    %572 = vmatpush.msra.mxu0 0.0
    %573 = vmatpush.msra.mxu0 0.0
    %574 = vmatpush.msra.mxu0 0.0
    %575 = vmatpush.msra.mxu0 0.0
    %576 = vmatpush.msra.mxu0 0.0
    %577 = vmatpush.msra.mxu0 0.0
    %578 = vmatpush.msra.mxu0 0.0
    %579 = vmatpush.msra.mxu0 0.0
    %580 = vmatpush.msra.mxu0 0.0
    %581 = vmatpush.msra.mxu0 0.0
    %582 = vmatpush.msra.mxu0 0.0
    %583 = vmatpush.msra.mxu0 0.0
    %584 = vmatpush.msra.mxu0 %v164
    %585 = vmatpush.msra.mxu0 %v162
    %586 = vmatpush.msra.mxu0 %v160
    %587 = vmatpush.msra.mxu0 %v158
    %588 = vmatmul.f32.gmra.mxu0 %v550
    %v589 = vpop.f32.mrf.mxu0
    %v590 = vadd.f32 0.0, %v589
    %591 = vdwg.mxu0
    %v592 = vadd.f32 %v423, 0.0
    %v594 = vperm.slane %v170, 0
    %v596 = vadd.f32 %v592, %v594
    %v597 = vxor.u32 %v596, 2147483648
    %v598 = vmul.f32 %v597, 1.442695
    %v599 = vpow.pop %v598
    %v600 = vadd.f32 %v599, 1.0
    %v601 = vrcp.pop %v600
    %v602 = vmul.f32 %v600, %v601
    %v603 = vsub.f32 1.0, %v602
    %v604 = vmul.f32 %v601, %v603
    %v605 = vadd.f32 %v601, %v604
    %vm606 = vweird.f32 %v600
    %vm607 = vweird.f32 %v601
    %vm608 = vmor %vm606, %vm607
    %v609 = vsel %vm608, %v601, %v605
    %v610 = vand.u32 2147483647, %v600
    %vm611 = vcmp.eq.f32.partialorder %v610, 8.507059e+37
    %v612 = vand.u32 %v600, 2147483648
    %v613 = vor.u32 1.1754944e-38, %v612
    %v614 = vsel %vm611, %v613, %v609
    %v615 = vmul.f32 1.0, %v614
    %v616 = vtanh.pop %v596
    %v617 = vmul.f32 %v615, 0.0
    %619 = vrot.lane.b32.xlu0 %v616, 64
    %v620 = vpop.permute.xlu0 %619
    %v622 = vmul.f32 %v615, %v620
    %624 = vrot.lane.b32.xlu0 %v622, 32
    %v625 = vpop.permute.xlu0 %624
    %v627 = vadd.f32 %v617, %v625
    %v628 = vtanh.pop %v627
    %630 = vrot.lane.b32.xlu0 %v628, 64
    %v631 = vpop.permute.xlu0 %630
    %v633 = vmul.f32 %v615, %v631
    %635 = vrot.lane.b32.xlu0 %v633, 32
    %v636 = vpop.permute.xlu0 %635
    %v637 = vsel %vm212, %v636, 0
    %639 = vmatpush.msra.mxu0 0.0
    %640 = vmatpush.msra.mxu0 0.0
    %641 = vmatpush.msra.mxu0 0.0
    %642 = vmatpush.msra.mxu0 0.0
    %643 = vmatpush.msra.mxu0 0.0
    %644 = vmatpush.msra.mxu0 0.0
    %645 = vmatpush.msra.mxu0 0.0
    %646 = vmatpush.msra.mxu0 0.0
    %647 = vmatpush.msra.mxu0 0.0
    %648 = vmatpush.msra.mxu0 0.0
    %649 = vmatpush.msra.mxu0 0.0
    %650 = vmatpush.msra.mxu0 0.0
    %651 = vmatpush.msra.mxu0 %v168
    %652 = vmatpush.msra.mxu0 %v167
    %653 = vmatpush.msra.mxu0 %v166
    %654 = vmatpush.msra.mxu0 %v165
    %655 = vmatmul.f32.gmra.mxu0 %v637
    %v656 = vpop.f32.mrf.mxu0
    %v657 = vadd.f32 0.0, %v656
    %658 = vdwg.mxu0
    %v659 = vadd.f32 %v135, %v486
    %v660 = vxor.u32 %v659, 2147483648
    %v661 = vmul.f32 %v660, 1.442695
    %v662 = vpow.pop %v661
    %v663 = vadd.f32 %v662, 1.0
    %v664 = vrcp.pop %v663
    %v665 = vmul.f32 %v663, %v664
    %v666 = vsub.f32 1.0, %v665
    %v667 = vmul.f32 %v664, %v666
    %v668 = vadd.f32 %v664, %v667
    %vm669 = vweird.f32 %v663
    %vm670 = vweird.f32 %v664
    %vm671 = vmor %vm669, %vm670
    %v672 = vsel %vm671, %v664, %v668
    %v673 = vand.u32 2147483647, %v663
    %vm674 = vcmp.eq.f32.partialorder %v673, 8.507059e+37
    %v675 = vand.u32 %v663, 2147483648
    %v676 = vor.u32 1.1754944e-38, %v675
    %v677 = vsel %vm674, %v676, %v672
    %v678 = vmul.f32 1.0, %v677
    %v679 = vtanh.pop %v659
    %v680 = vmul.f32 %v678, %v456
    %682 = vrot.lane.b32.xlu0 %v679, 64
    %v683 = vpop.permute.xlu0 %682
    %v685 = vmul.f32 %v678, %v683
    %687 = vrot.lane.b32.xlu0 %v685, 32
    %v688 = vpop.permute.xlu0 %687
    %v690 = vadd.f32 %v680, %v688
    %v691 = vtanh.pop %v690
    %693 = vrot.lane.b32.xlu0 %v691, 64
    %v694 = vpop.permute.xlu0 %693
    %v696 = vmul.f32 %v678, %v694
    %698 = vrot.lane.b32.xlu0 %v696, 32
    %v699 = vpop.permute.xlu0 %698
    %v700 = vsel %vm212, %v699, 0
    %702 = vmatpush.msra.mxu0 0.0
    %703 = vmatpush.msra.mxu0 0.0
    %704 = vmatpush.msra.mxu0 0.0
    %705 = vmatpush.msra.mxu0 0.0
    %706 = vmatpush.msra.mxu0 0.0
    %707 = vmatpush.msra.mxu0 0.0
    %708 = vmatpush.msra.mxu0 0.0
    %709 = vmatpush.msra.mxu0 0.0
    %710 = vmatpush.msra.mxu0 0.0
    %711 = vmatpush.msra.mxu0 0.0
    %712 = vmatpush.msra.mxu0 0.0
    %713 = vmatpush.msra.mxu0 0.0
    %714 = vmatpush.msra.mxu0 %v155
    %715 = vmatpush.msra.mxu0 %v153
    %716 = vmatpush.msra.mxu0 %v151
    %717 = vmatpush.msra.mxu0 %v149
    %718 = vmatmul.f32.gmra.mxu0 %v700
    %v719 = vpop.f32.mrf.mxu0
    %v720 = vadd.f32 0.0, %v719
    %721 = vdwg.mxu0
    %722 = vmatpush.msra.mxu0 0.0
    %723 = vmatpush.msra.mxu0 0.0
    %724 = vmatpush.msra.mxu0 0.0
    %725 = vmatpush.msra.mxu0 0.0
    %726 = vmatpush.msra.mxu0 0.0
    %727 = vmatpush.msra.mxu0 0.0
    %728 = vmatpush.msra.mxu0 0.0
    %729 = vmatpush.msra.mxu0 0.0
    %730 = vmatpush.msra.mxu0 0.0
    %731 = vmatpush.msra.mxu0 0.0
    %732 = vmatpush.msra.mxu0 0.0
    %733 = vmatpush.msra.mxu0 0.0
    %734 = vmatpush.msra.mxu0 %v156
    %735 = vmatpush.msra.mxu0 %v154
    %736 = vmatpush.msra.mxu0 %v152
    %737 = vmatpush.msra.mxu0 %v150
    %738 = vmatmul.f32.gmra.mxu0 %v700
    %v739 = vpop.f32.mrf.mxu0
    %v740 = vadd.f32 0.0, %v739
    %741 = vdwg.mxu0
    %v742 = vadd.f32 %v506, %v570
    %v743 = vadd.f32 %v742, %v340
    %v744 = vxor.u32 %v743, 2147483648
    %v745 = vmul.f32 %v744, 1.442695
    %v746 = vpow.pop %v745
    %v747 = vadd.f32 %v746, 1.0
    %v748 = vrcp.pop %v747
    %v749 = vmul.f32 %v747, %v748
    %v750 = vsub.f32 1.0, %v749
    %v751 = vmul.f32 %v748, %v750
    %v752 = vadd.f32 %v748, %v751
    %vm753 = vweird.f32 %v747
    %vm754 = vweird.f32 %v748
    %vm755 = vmor %vm753, %vm754
    %v756 = vsel %vm755, %v748, %v752
    %v757 = vand.u32 2147483647, %v747
    %vm758 = vcmp.eq.f32.partialorder %v757, 8.507059e+37
    %v759 = vand.u32 %v747, 2147483648
    %v760 = vor.u32 1.1754944e-38, %v759
    %v761 = vsel %vm758, %v760, %v756
    %v762 = vmul.f32 1.0, %v761
    %v763 = vtanh.pop %v743
    %v764 = vmul.f32 %v762, %v540
    %766 = vrot.lane.b32.xlu0 %v763, 64
    %v767 = vpop.permute.xlu0 %766
    %v769 = vmul.f32 %v762, %v767
    %771 = vrot.lane.b32.xlu0 %v769, 32
    %v772 = vpop.permute.xlu0 %771
    %v774 = vadd.f32 %v764, %v772
    %v775 = vtanh.pop %v774
    %777 = vrot.lane.b32.xlu0 %v775, 64
    %v778 = vpop.permute.xlu0 %777
    %v780 = vmul.f32 %v762, %v778
    %782 = vrot.lane.b32.xlu0 %v780, 32
    %v783 = vpop.permute.xlu0 %782
    %v784 = vsel %vm212, %v783, 0
    %786 = vmatpush.msra.mxu0 0.0
    %787 = vmatpush.msra.mxu0 0.0
    %788 = vmatpush.msra.mxu0 0.0
    %789 = vmatpush.msra.mxu0 0.0
    %790 = vmatpush.msra.mxu0 0.0
    %791 = vmatpush.msra.mxu0 0.0
    %792 = vmatpush.msra.mxu0 0.0
    %793 = vmatpush.msra.mxu0 0.0
    %794 = vmatpush.msra.mxu0 0.0
    %795 = vmatpush.msra.mxu0 0.0
    %796 = vmatpush.msra.mxu0 0.0
    %797 = vmatpush.msra.mxu0 0.0
    %798 = vmatpush.msra.mxu0 %v163
    %799 = vmatpush.msra.mxu0 %v161
    %800 = vmatpush.msra.mxu0 %v159
    %801 = vmatpush.msra.mxu0 %v157
    %802 = vmatmul.f32.gmra.mxu0 %v784
    %v803 = vpop.f32.mrf.mxu0
    %v804 = vadd.f32 0.0, %v803
    %805 = vdwg.mxu0
    %806 = vmatpush.msra.mxu0 0.0
    %807 = vmatpush.msra.mxu0 0.0
    %808 = vmatpush.msra.mxu0 0.0
    %809 = vmatpush.msra.mxu0 0.0
    %810 = vmatpush.msra.mxu0 0.0
    %811 = vmatpush.msra.mxu0 0.0
    %812 = vmatpush.msra.mxu0 0.0
    %813 = vmatpush.msra.mxu0 0.0
    %814 = vmatpush.msra.mxu0 0.0
    %815 = vmatpush.msra.mxu0 0.0
    %816 = vmatpush.msra.mxu0 0.0
    %817 = vmatpush.msra.mxu0 0.0
    %818 = vmatpush.msra.mxu0 %v164
    %819 = vmatpush.msra.mxu0 %v162
    %820 = vmatpush.msra.mxu0 %v160
    %821 = vmatpush.msra.mxu0 %v158
    %822 = vmatmul.f32.gmra.mxu0 %v784
    %v823 = vpop.f32.mrf.mxu0
    %v824 = vadd.f32 0.0, %v823
    %825 = vdwg.mxu0
    %v826 = vadd.f32 %v590, %v657
    %v827 = vadd.f32 %v826, %v594
    %v828 = vxor.u32 %v827, 2147483648
    %v829 = vmul.f32 %v828, 1.442695
    %v830 = vpow.pop %v829
    %v831 = vadd.f32 %v830, 1.0
    %v832 = vrcp.pop %v831
    %v833 = vmul.f32 %v831, %v832
    %v834 = vsub.f32 1.0, %v833
    %v835 = vmul.f32 %v832, %v834
    %v836 = vadd.f32 %v832, %v835
    %vm837 = vweird.f32 %v831
    %vm838 = vweird.f32 %v832
    %vm839 = vmor %vm837, %vm838
    %v840 = vsel %vm839, %v832, %v836
    %v841 = vand.u32 2147483647, %v831
    %vm842 = vcmp.eq.f32.partialorder %v841, 8.507059e+37
    %v843 = vand.u32 %v831, 2147483648
    %v844 = vor.u32 1.1754944e-38, %v843
    %v845 = vsel %vm842, %v844, %v840
    %v846 = vmul.f32 1.0, %v845
    %v847 = vtanh.pop %v827
    %v848 = vmul.f32 %v846, %v627
    %850 = vrot.lane.b32.xlu0 %v847, 64
    %v851 = vpop.permute.xlu0 %850
    %v853 = vmul.f32 %v846, %v851
    %855 = vrot.lane.b32.xlu0 %v853, 32
    %v856 = vpop.permute.xlu0 %855
    %v858 = vadd.f32 %v848, %v856
    %v859 = vtanh.pop %v858
    %861 = vrot.lane.b32.xlu0 %v859, 64
    %v862 = vpop.permute.xlu0 %861
    %v864 = vmul.f32 %v846, %v862
    %866 = vrot.lane.b32.xlu0 %v864, 32
    %v867 = vpop.permute.xlu0 %866
    %v868 = vsel %vm212, %v867, 0
    %870 = vmatpush.msra.mxu0 0.0
    %871 = vmatpush.msra.mxu0 0.0
    %872 = vmatpush.msra.mxu0 0.0
    %873 = vmatpush.msra.mxu0 0.0
    %874 = vmatpush.msra.mxu0 0.0
    %875 = vmatpush.msra.mxu0 0.0
    %876 = vmatpush.msra.mxu0 0.0
    %877 = vmatpush.msra.mxu0 0.0
    %878 = vmatpush.msra.mxu0 0.0
    %879 = vmatpush.msra.mxu0 0.0
    %880 = vmatpush.msra.mxu0 0.0
    %881 = vmatpush.msra.mxu0 0.0
    %882 = vmatpush.msra.mxu0 %v168
    %883 = vmatpush.msra.mxu0 %v167
    %884 = vmatpush.msra.mxu0 %v166
    %885 = vmatpush.msra.mxu0 %v165
    %886 = vmatmul.f32.gmra.mxu0 %v868
    %v887 = vpop.f32.mrf.mxu0
    %v888 = vadd.f32 0.0, %v887
    %889 = vdwg.mxu0
    %v890 = vadd.f32 %v138, %v720
    %v891 = vxor.u32 %v890, 2147483648
    %v892 = vmul.f32 %v891, 1.442695
    %v893 = vpow.pop %v892
    %v894 = vadd.f32 %v893, 1.0
    %v895 = vrcp.pop %v894
    %v896 = vmul.f32 %v894, %v895
    %v897 = vsub.f32 1.0, %v896
    %v898 = vmul.f32 %v895, %v897
    %v899 = vadd.f32 %v895, %v898
    %vm900 = vweird.f32 %v894
    %vm901 = vweird.f32 %v895
    %vm902 = vmor %vm900, %vm901
    %v903 = vsel %vm902, %v895, %v899
    %v904 = vand.u32 2147483647, %v894
    %vm905 = vcmp.eq.f32.partialorder %v904, 8.507059e+37
    %v906 = vand.u32 %v894, 2147483648
    %v907 = vor.u32 1.1754944e-38, %v906
    %v908 = vsel %vm905, %v907, %v903
    %v909 = vmul.f32 1.0, %v908
    %v910 = vtanh.pop %v890
    %v911 = vmul.f32 %v909, %v690
    %913 = vrot.lane.b32.xlu0 %v910, 64
    %v914 = vpop.permute.xlu0 %913
    %v916 = vmul.f32 %v909, %v914
    %918 = vrot.lane.b32.xlu0 %v916, 32
    %v919 = vpop.permute.xlu0 %918
    %v921 = vadd.f32 %v911, %v919
    %v922 = vtanh.pop %v921
    %924 = vrot.lane.b32.xlu0 %v922, 64
    %v925 = vpop.permute.xlu0 %924
    %v927 = vmul.f32 %v909, %v925
    %929 = vrot.lane.b32.xlu0 %v927, 32
    %v930 = vpop.permute.xlu0 %929
    %v931 = vsel %vm212, %v930, 0
    %933 = vmatpush.msra.mxu0 0.0
    %934 = vmatpush.msra.mxu0 0.0
    %935 = vmatpush.msra.mxu0 0.0
    %936 = vmatpush.msra.mxu0 0.0
    %937 = vmatpush.msra.mxu0 0.0
    %938 = vmatpush.msra.mxu0 0.0
    %939 = vmatpush.msra.mxu0 0.0
    %940 = vmatpush.msra.mxu0 0.0
    %941 = vmatpush.msra.mxu0 0.0
    %942 = vmatpush.msra.mxu0 0.0
    %943 = vmatpush.msra.mxu0 0.0
    %944 = vmatpush.msra.mxu0 0.0
    %945 = vmatpush.msra.mxu0 %v155
    %946 = vmatpush.msra.mxu0 %v153
    %947 = vmatpush.msra.mxu0 %v151
    %948 = vmatpush.msra.mxu0 %v149
    %949 = vmatmul.f32.gmra.mxu0 %v931
    %v950 = vpop.f32.mrf.mxu0
    %v951 = vadd.f32 0.0, %v950
    %952 = vdwg.mxu0
    %953 = vmatpush.msra.mxu0 0.0
    %954 = vmatpush.msra.mxu0 0.0
    %955 = vmatpush.msra.mxu0 0.0
    %956 = vmatpush.msra.mxu0 0.0
    %957 = vmatpush.msra.mxu0 0.0
    %958 = vmatpush.msra.mxu0 0.0
    %959 = vmatpush.msra.mxu0 0.0
    %960 = vmatpush.msra.mxu0 0.0
    %961 = vmatpush.msra.mxu0 0.0
    %962 = vmatpush.msra.mxu0 0.0
    %963 = vmatpush.msra.mxu0 0.0
    %964 = vmatpush.msra.mxu0 0.0
    %965 = vmatpush.msra.mxu0 %v156
    %966 = vmatpush.msra.mxu0 %v154
    %967 = vmatpush.msra.mxu0 %v152
    %968 = vmatpush.msra.mxu0 %v150
    %969 = vmatmul.f32.gmra.mxu0 %v931
    %v970 = vpop.f32.mrf.mxu0
    %v971 = vadd.f32 0.0, %v970
    %972 = vdwg.mxu0
    %v973 = vadd.f32 %v740, %v804
    %v974 = vadd.f32 %v973, %v340
    %v975 = vxor.u32 %v974, 2147483648
    %v976 = vmul.f32 %v975, 1.442695
    %v977 = vpow.pop %v976
    %v978 = vadd.f32 %v977, 1.0
    %v979 = vrcp.pop %v978
    %v980 = vmul.f32 %v978, %v979
    %v981 = vsub.f32 1.0, %v980
    %v982 = vmul.f32 %v979, %v981
    %v983 = vadd.f32 %v979, %v982
    %vm984 = vweird.f32 %v978
    %vm985 = vweird.f32 %v979
    %vm986 = vmor %vm984, %vm985
    %v987 = vsel %vm986, %v979, %v983
    %v988 = vand.u32 2147483647, %v978
    %vm989 = vcmp.eq.f32.partialorder %v988, 8.507059e+37
    %v990 = vand.u32 %v978, 2147483648
    %v991 = vor.u32 1.1754944e-38, %v990
    %v992 = vsel %vm989, %v991, %v987
    %v993 = vmul.f32 1.0, %v992
    %v994 = vtanh.pop %v974
    %v995 = vmul.f32 %v993, %v774
    %997 = vrot.lane.b32.xlu0 %v994, 64
    %v998 = vpop.permute.xlu0 %997
    %v1000 = vmul.f32 %v993, %v998
    %1002 = vrot.lane.b32.xlu0 %v1000, 32
    %v1003 = vpop.permute.xlu0 %1002
    %v1005 = vadd.f32 %v995, %v1003
    %v1006 = vtanh.pop %v1005
    %1008 = vrot.lane.b32.xlu0 %v1006, 64
    %v1009 = vpop.permute.xlu0 %1008
    %v1011 = vmul.f32 %v993, %v1009
    %1013 = vrot.lane.b32.xlu0 %v1011, 32
    %v1014 = vpop.permute.xlu0 %1013
    %v1015 = vsel %vm212, %v1014, 0
    %1017 = vmatpush.msra.mxu0 0.0
    %1018 = vmatpush.msra.mxu0 0.0
    %1019 = vmatpush.msra.mxu0 0.0
    %1020 = vmatpush.msra.mxu0 0.0
    %1021 = vmatpush.msra.mxu0 0.0
    %1022 = vmatpush.msra.mxu0 0.0
    %1023 = vmatpush.msra.mxu0 0.0
    %1024 = vmatpush.msra.mxu0 0.0
    %1025 = vmatpush.msra.mxu0 0.0
    %1026 = vmatpush.msra.mxu0 0.0
    %1027 = vmatpush.msra.mxu0 0.0
    %1028 = vmatpush.msra.mxu0 0.0
    %1029 = vmatpush.msra.mxu0 %v163
    %1030 = vmatpush.msra.mxu0 %v161
    %1031 = vmatpush.msra.mxu0 %v159
    %1032 = vmatpush.msra.mxu0 %v157
    %1033 = vmatmul.f32.gmra.mxu0 %v1015
    %v1034 = vpop.f32.mrf.mxu0
    %v1035 = vadd.f32 0.0, %v1034
    %1036 = vdwg.mxu0
    %1037 = vmatpush.msra.mxu0 0.0
    %1038 = vmatpush.msra.mxu0 0.0
    %1039 = vmatpush.msra.mxu0 0.0
    %1040 = vmatpush.msra.mxu0 0.0
    %1041 = vmatpush.msra.mxu0 0.0
    %1042 = vmatpush.msra.mxu0 0.0
    %1043 = vmatpush.msra.mxu0 0.0
    %1044 = vmatpush.msra.mxu0 0.0
    %1045 = vmatpush.msra.mxu0 0.0
    %1046 = vmatpush.msra.mxu0 0.0
    %1047 = vmatpush.msra.mxu0 0.0
    %1048 = vmatpush.msra.mxu0 0.0
    %1049 = vmatpush.msra.mxu0 %v164
    %1050 = vmatpush.msra.mxu0 %v162
    %1051 = vmatpush.msra.mxu0 %v160
    %1052 = vmatpush.msra.mxu0 %v158
    %1053 = vmatmul.f32.gmra.mxu0 %v1015
    %v1054 = vpop.f32.mrf.mxu0
    %v1055 = vadd.f32 0.0, %v1054
    %1056 = vdwg.mxu0
    %v1057 = vadd.f32 %v824, %v888
    %v1058 = vadd.f32 %v1057, %v594
    %v1059 = vxor.u32 %v1058, 2147483648
    %v1060 = vmul.f32 %v1059, 1.442695
    %v1061 = vpow.pop %v1060
    %v1062 = vadd.f32 %v1061, 1.0
    %v1063 = vrcp.pop %v1062
    %v1064 = vmul.f32 %v1062, %v1063
    %v1065 = vsub.f32 1.0, %v1064
    %v1066 = vmul.f32 %v1063, %v1065
    %v1067 = vadd.f32 %v1063, %v1066
    %vm1068 = vweird.f32 %v1062
    %vm1069 = vweird.f32 %v1063
    %vm1070 = vmor %vm1068, %vm1069
    %v1071 = vsel %vm1070, %v1063, %v1067
    %v1072 = vand.u32 2147483647, %v1062
    %vm1073 = vcmp.eq.f32.partialorder %v1072, 8.507059e+37
    %v1074 = vand.u32 %v1062, 2147483648
    %v1075 = vor.u32 1.1754944e-38, %v1074
    %v1076 = vsel %vm1073, %v1075, %v1071
    %v1077 = vmul.f32 1.0, %v1076
    %v1078 = vtanh.pop %v1058
    %v1079 = vmul.f32 %v1077, %v858
    %1081 = vrot.lane.b32.xlu0 %v1078, 64
    %v1082 = vpop.permute.xlu0 %1081
    %v1084 = vmul.f32 %v1077, %v1082
    %1086 = vrot.lane.b32.xlu0 %v1084, 32
    %v1087 = vpop.permute.xlu0 %1086
    %v1089 = vadd.f32 %v1079, %v1087
    %v1090 = vtanh.pop %v1089
    %1092 = vrot.lane.b32.xlu0 %v1090, 64
    %v1093 = vpop.permute.xlu0 %1092
    %v1095 = vmul.f32 %v1077, %v1093
    %1097 = vrot.lane.b32.xlu0 %v1095, 32
    %v1098 = vpop.permute.xlu0 %1097
    %v1099 = vsel %vm212, %v1098, 0
    %1101 = vmatpush.msra.mxu0 0.0
    %1102 = vmatpush.msra.mxu0 0.0
    %1103 = vmatpush.msra.mxu0 0.0
    %1104 = vmatpush.msra.mxu0 0.0
    %1105 = vmatpush.msra.mxu0 0.0
    %1106 = vmatpush.msra.mxu0 0.0
    %1107 = vmatpush.msra.mxu0 0.0
    %1108 = vmatpush.msra.mxu0 0.0
    %1109 = vmatpush.msra.mxu0 0.0
    %1110 = vmatpush.msra.mxu0 0.0
    %1111 = vmatpush.msra.mxu0 0.0
    %1112 = vmatpush.msra.mxu0 0.0
    %1113 = vmatpush.msra.mxu0 %v168
    %1114 = vmatpush.msra.mxu0 %v167
    %1115 = vmatpush.msra.mxu0 %v166
    %1116 = vmatpush.msra.mxu0 %v165
    %1117 = vmatmul.f32.gmra.mxu0 %v1099
    %v1118 = vpop.f32.mrf.mxu0
    %v1119 = vadd.f32 0.0, %v1118
    %1120 = vdwg.mxu0
    %v1121 = vadd.f32 %v141, %v951
    %v1122 = vxor.u32 %v1121, 2147483648
    %v1123 = vmul.f32 %v1122, 1.442695
    %v1124 = vpow.pop %v1123
    %v1125 = vadd.f32 %v1124, 1.0
    %v1126 = vrcp.pop %v1125
    %v1127 = vmul.f32 %v1125, %v1126
    %v1128 = vsub.f32 1.0, %v1127
    %v1129 = vmul.f32 %v1126, %v1128
    %v1130 = vadd.f32 %v1126, %v1129
    %vm1131 = vweird.f32 %v1125
    %vm1132 = vweird.f32 %v1126
    %vm1133 = vmor %vm1131, %vm1132
    %v1134 = vsel %vm1133, %v1126, %v1130
    %v1135 = vand.u32 2147483647, %v1125
    %vm1136 = vcmp.eq.f32.partialorder %v1135, 8.507059e+37
    %v1137 = vand.u32 %v1125, 2147483648
    %v1138 = vor.u32 1.1754944e-38, %v1137
    %v1139 = vsel %vm1136, %v1138, %v1134
    %v1140 = vmul.f32 1.0, %v1139
    %v1141 = vtanh.pop %v1121
    %v1142 = vmul.f32 %v1140, %v921
    %1144 = vrot.lane.b32.xlu0 %v1141, 64
    %v1145 = vpop.permute.xlu0 %1144
    %v1147 = vmul.f32 %v1140, %v1145
    %1149 = vrot.lane.b32.xlu0 %v1147, 32
    %v1150 = vpop.permute.xlu0 %1149
    %v1152 = vadd.f32 %v1142, %v1150
    %v1153 = vtanh.pop %v1152
    %1155 = vrot.lane.b32.xlu0 %v1153, 64
    %v1156 = vpop.permute.xlu0 %1155
    %v1158 = vmul.f32 %v1140, %v1156
    %1160 = vrot.lane.b32.xlu0 %v1158, 32
    %v1161 = vpop.permute.xlu0 %1160
    %v1162 = vsel %vm212, %v1161, 0
    %1164 = vmatpush.msra.mxu0 0.0
    %1165 = vmatpush.msra.mxu0 0.0
    %1166 = vmatpush.msra.mxu0 0.0
    %1167 = vmatpush.msra.mxu0 0.0
    %1168 = vmatpush.msra.mxu0 0.0
    %1169 = vmatpush.msra.mxu0 0.0
    %1170 = vmatpush.msra.mxu0 0.0
    %1171 = vmatpush.msra.mxu0 0.0
    %1172 = vmatpush.msra.mxu0 0.0
    %1173 = vmatpush.msra.mxu0 0.0
    %1174 = vmatpush.msra.mxu0 0.0
    %1175 = vmatpush.msra.mxu0 0.0
    %1176 = vmatpush.msra.mxu0 %v155
    %1177 = vmatpush.msra.mxu0 %v153
    %1178 = vmatpush.msra.mxu0 %v151
    %1179 = vmatpush.msra.mxu0 %v149
    %1180 = vmatmul.f32.gmra.mxu0 %v1162
    %v1181 = vpop.f32.mrf.mxu0
    %v1182 = vadd.f32 0.0, %v1181
    %1183 = vdwg.mxu0
    %1184 = vmatpush.msra.mxu0 0.0
    %1185 = vmatpush.msra.mxu0 0.0
    %1186 = vmatpush.msra.mxu0 0.0
    %1187 = vmatpush.msra.mxu0 0.0
    %1188 = vmatpush.msra.mxu0 0.0
    %1189 = vmatpush.msra.mxu0 0.0
    %1190 = vmatpush.msra.mxu0 0.0
    %1191 = vmatpush.msra.mxu0 0.0
    %1192 = vmatpush.msra.mxu0 0.0
    %1193 = vmatpush.msra.mxu0 0.0
    %1194 = vmatpush.msra.mxu0 0.0
    %1195 = vmatpush.msra.mxu0 0.0
    %1196 = vmatpush.msra.mxu0 %v156
    %1197 = vmatpush.msra.mxu0 %v154
    %1198 = vmatpush.msra.mxu0 %v152
    %1199 = vmatpush.msra.mxu0 %v150
    %1200 = vmatmul.f32.gmra.mxu0 %v1162
    %v1201 = vpop.f32.mrf.mxu0
    %v1202 = vadd.f32 0.0, %v1201
    %1203 = vdwg.mxu0
    %v1204 = vadd.f32 %v971, %v1035
    %v1205 = vadd.f32 %v1204, %v340
    %v1206 = vxor.u32 %v1205, 2147483648
    %v1207 = vmul.f32 %v1206, 1.442695
    %v1208 = vpow.pop %v1207
    %v1209 = vadd.f32 %v1208, 1.0
    %v1210 = vrcp.pop %v1209
    %v1211 = vmul.f32 %v1209, %v1210
    %v1212 = vsub.f32 1.0, %v1211
    %v1213 = vmul.f32 %v1210, %v1212
    %v1214 = vadd.f32 %v1210, %v1213
    %vm1215 = vweird.f32 %v1209
    %vm1216 = vweird.f32 %v1210
    %vm1217 = vmor %vm1215, %vm1216
    %v1218 = vsel %vm1217, %v1210, %v1214
    %v1219 = vand.u32 2147483647, %v1209
    %vm1220 = vcmp.eq.f32.partialorder %v1219, 8.507059e+37
    %v1221 = vand.u32 %v1209, 2147483648
    %v1222 = vor.u32 1.1754944e-38, %v1221
    %v1223 = vsel %vm1220, %v1222, %v1218
    %v1224 = vmul.f32 1.0, %v1223
    %v1225 = vtanh.pop %v1205
    %v1226 = vmul.f32 %v1224, %v1005
    %1228 = vrot.lane.b32.xlu0 %v1225, 64
    %v1229 = vpop.permute.xlu0 %1228
    %v1231 = vmul.f32 %v1224, %v1229
    %1233 = vrot.lane.b32.xlu0 %v1231, 32
    %v1234 = vpop.permute.xlu0 %1233
    %v1236 = vadd.f32 %v1226, %v1234
    %v1237 = vtanh.pop %v1236
    %1239 = vrot.lane.b32.xlu0 %v1237, 64
    %v1240 = vpop.permute.xlu0 %1239
    %v1242 = vmul.f32 %v1224, %v1240
    %1244 = vrot.lane.b32.xlu0 %v1242, 32
    %v1245 = vpop.permute.xlu0 %1244
    %v1246 = vsel %vm212, %v1245, 0
    %1248 = vmatpush.msra.mxu0 0.0
    %1249 = vmatpush.msra.mxu0 0.0
    %1250 = vmatpush.msra.mxu0 0.0
    %1251 = vmatpush.msra.mxu0 0.0
    %1252 = vmatpush.msra.mxu0 0.0
    %1253 = vmatpush.msra.mxu0 0.0
    %1254 = vmatpush.msra.mxu0 0.0
    %1255 = vmatpush.msra.mxu0 0.0
    %1256 = vmatpush.msra.mxu0 0.0
    %1257 = vmatpush.msra.mxu0 0.0
    %1258 = vmatpush.msra.mxu0 0.0
    %1259 = vmatpush.msra.mxu0 0.0
    %1260 = vmatpush.msra.mxu0 %v163
    %1261 = vmatpush.msra.mxu0 %v161
    %1262 = vmatpush.msra.mxu0 %v159
    %1263 = vmatpush.msra.mxu0 %v157
    %1264 = vmatmul.f32.gmra.mxu0 %v1246
    %v1265 = vpop.f32.mrf.mxu0
    %v1266 = vadd.f32 0.0, %v1265
    %1267 = vdwg.mxu0
    %1268 = vmatpush.msra.mxu0 0.0
    %1269 = vmatpush.msra.mxu0 0.0
    %1270 = vmatpush.msra.mxu0 0.0
    %1271 = vmatpush.msra.mxu0 0.0
    %1272 = vmatpush.msra.mxu0 0.0
    %1273 = vmatpush.msra.mxu0 0.0
    %1274 = vmatpush.msra.mxu0 0.0
    %1275 = vmatpush.msra.mxu0 0.0
    %1276 = vmatpush.msra.mxu0 0.0
    %1277 = vmatpush.msra.mxu0 0.0
    %1278 = vmatpush.msra.mxu0 0.0
    %1279 = vmatpush.msra.mxu0 0.0
    %1280 = vmatpush.msra.mxu0 %v164
    %1281 = vmatpush.msra.mxu0 %v162
    %1282 = vmatpush.msra.mxu0 %v160
    %1283 = vmatpush.msra.mxu0 %v158
    %1284 = vmatmul.f32.gmra.mxu0 %v1246
    %v1285 = vpop.f32.mrf.mxu0
    %v1286 = vadd.f32 0.0, %v1285
    %1287 = vdwg.mxu0
    %v1288 = vadd.f32 %v1055, %v1119
    %v1289 = vadd.f32 %v1288, %v594
    %v1290 = vxor.u32 %v1289, 2147483648
    %v1291 = vmul.f32 %v1290, 1.442695
    %v1292 = vpow.pop %v1291
    %v1293 = vadd.f32 %v1292, 1.0
    %v1294 = vrcp.pop %v1293
    %v1295 = vmul.f32 %v1293, %v1294
    %v1296 = vsub.f32 1.0, %v1295
    %v1297 = vmul.f32 %v1294, %v1296
    %v1298 = vadd.f32 %v1294, %v1297
    %vm1299 = vweird.f32 %v1293
    %vm1300 = vweird.f32 %v1294
    %vm1301 = vmor %vm1299, %vm1300
    %v1302 = vsel %vm1301, %v1294, %v1298
    %v1303 = vand.u32 2147483647, %v1293
    %vm1304 = vcmp.eq.f32.partialorder %v1303, 8.507059e+37
    %v1305 = vand.u32 %v1293, 2147483648
    %v1306 = vor.u32 1.1754944e-38, %v1305
    %v1307 = vsel %vm1304, %v1306, %v1302
    %v1308 = vmul.f32 1.0, %v1307
    %v1309 = vtanh.pop %v1289
    %v1310 = vmul.f32 %v1308, %v1089
    %1312 = vrot.lane.b32.xlu0 %v1309, 64
    %v1313 = vpop.permute.xlu0 %1312
    %v1315 = vmul.f32 %v1308, %v1313
    %1317 = vrot.lane.b32.xlu0 %v1315, 32
    %v1318 = vpop.permute.xlu0 %1317
    %v1320 = vadd.f32 %v1310, %v1318
    %v1321 = vtanh.pop %v1320
    %1323 = vrot.lane.b32.xlu0 %v1321, 64
    %v1324 = vpop.permute.xlu0 %1323
    %v1326 = vmul.f32 %v1308, %v1324
    %1328 = vrot.lane.b32.xlu0 %v1326, 32
    %v1329 = vpop.permute.xlu0 %1328
    %v1330 = vsel %vm212, %v1329, 0
    %1332 = vmatpush.msra.mxu0 0.0
    %1333 = vmatpush.msra.mxu0 0.0
    %1334 = vmatpush.msra.mxu0 0.0
    %1335 = vmatpush.msra.mxu0 0.0
    %1336 = vmatpush.msra.mxu0 0.0
    %1337 = vmatpush.msra.mxu0 0.0
    %1338 = vmatpush.msra.mxu0 0.0
    %1339 = vmatpush.msra.mxu0 0.0
    %1340 = vmatpush.msra.mxu0 0.0
    %1341 = vmatpush.msra.mxu0 0.0
    %1342 = vmatpush.msra.mxu0 0.0
    %1343 = vmatpush.msra.mxu0 0.0
    %1344 = vmatpush.msra.mxu0 %v168
    %1345 = vmatpush.msra.mxu0 %v167
    %1346 = vmatpush.msra.mxu0 %v166
    %1347 = vmatpush.msra.mxu0 %v165
    %1348 = vmatmul.f32.gmra.mxu0 %v1330
    %v1349 = vpop.f32.mrf.mxu0
    %v1350 = vadd.f32 0.0, %v1349
    %1351 = vdwg.mxu0
    %v1352 = vadd.f32 %v144, %v1182
    %v1353 = vxor.u32 %v1352, 2147483648
    %v1354 = vmul.f32 %v1353, 1.442695
    %v1355 = vpow.pop %v1354
    %v1356 = vadd.f32 %v1355, 1.0
    %v1357 = vrcp.pop %v1356
    %v1358 = vmul.f32 %v1356, %v1357
    %v1359 = vsub.f32 1.0, %v1358
    %v1360 = vmul.f32 %v1357, %v1359
    %v1361 = vadd.f32 %v1357, %v1360
    %vm1362 = vweird.f32 %v1356
    %vm1363 = vweird.f32 %v1357
    %vm1364 = vmor %vm1362, %vm1363
    %v1365 = vsel %vm1364, %v1357, %v1361
    %v1366 = vand.u32 2147483647, %v1356
    %vm1367 = vcmp.eq.f32.partialorder %v1366, 8.507059e+37
    %v1368 = vand.u32 %v1356, 2147483648
    %v1369 = vor.u32 1.1754944e-38, %v1368
    %v1370 = vsel %vm1367, %v1369, %v1365
    %v1371 = vmul.f32 1.0, %v1370
    %v1372 = vtanh.pop %v1352
    %v1373 = vmul.f32 %v1371, %v1152
    %1375 = vrot.lane.b32.xlu0 %v1372, 64
    %v1376 = vpop.permute.xlu0 %1375
    %v1378 = vmul.f32 %v1371, %v1376
    %1380 = vrot.lane.b32.xlu0 %v1378, 32
    %v1381 = vpop.permute.xlu0 %1380
    %v1383 = vadd.f32 %v1373, %v1381
    %v1384 = vtanh.pop %v1383
    %1386 = vrot.lane.b32.xlu0 %v1384, 64
    %v1387 = vpop.permute.xlu0 %1386
    %v1389 = vmul.f32 %v1371, %v1387
    %1391 = vrot.lane.b32.xlu0 %v1389, 32
    %v1392 = vpop.permute.xlu0 %1391
    %v1393 = vsel %vm212, %v1392, 0
    %1395 = vmatpush.msra.mxu0 0.0
    %1396 = vmatpush.msra.mxu0 0.0
    %1397 = vmatpush.msra.mxu0 0.0
    %1398 = vmatpush.msra.mxu0 0.0
    %1399 = vmatpush.msra.mxu0 0.0
    %1400 = vmatpush.msra.mxu0 0.0
    %1401 = vmatpush.msra.mxu0 0.0
    %1402 = vmatpush.msra.mxu0 0.0
    %1403 = vmatpush.msra.mxu0 0.0
    %1404 = vmatpush.msra.mxu0 0.0
    %1405 = vmatpush.msra.mxu0 0.0
    %1406 = vmatpush.msra.mxu0 0.0
    %1407 = vmatpush.msra.mxu0 %v155
    %1408 = vmatpush.msra.mxu0 %v153
    %1409 = vmatpush.msra.mxu0 %v151
    %1410 = vmatpush.msra.mxu0 %v149
    %1411 = vmatmul.f32.gmra.mxu0 %v1393
    %v1412 = vpop.f32.mrf.mxu0
    %v1413 = vadd.f32 0.0, %v1412
    %1414 = vdwg.mxu0
    %1415 = vmatpush.msra.mxu0 0.0
    %1416 = vmatpush.msra.mxu0 0.0
    %1417 = vmatpush.msra.mxu0 0.0
    %1418 = vmatpush.msra.mxu0 0.0
    %1419 = vmatpush.msra.mxu0 0.0
    %1420 = vmatpush.msra.mxu0 0.0
    %1421 = vmatpush.msra.mxu0 0.0
    %1422 = vmatpush.msra.mxu0 0.0
    %1423 = vmatpush.msra.mxu0 0.0
    %1424 = vmatpush.msra.mxu0 0.0
    %1425 = vmatpush.msra.mxu0 0.0
    %1426 = vmatpush.msra.mxu0 0.0
    %1427 = vmatpush.msra.mxu0 %v156
    %1428 = vmatpush.msra.mxu0 %v154
    %1429 = vmatpush.msra.mxu0 %v152
    %1430 = vmatpush.msra.mxu0 %v150
    %1431 = vmatmul.f32.gmra.mxu0 %v1393
    %v1432 = vpop.f32.mrf.mxu0
    %v1433 = vadd.f32 0.0, %v1432
    %1434 = vdwg.mxu0
    %v1435 = vadd.f32 %v1202, %v1266
    %v1436 = vadd.f32 %v1435, %v340
    %v1437 = vxor.u32 %v1436, 2147483648
    %v1438 = vmul.f32 %v1437, 1.442695
    %v1439 = vpow.pop %v1438
    %v1440 = vadd.f32 %v1439, 1.0
    %v1441 = vrcp.pop %v1440
    %v1442 = vmul.f32 %v1440, %v1441
    %v1443 = vsub.f32 1.0, %v1442
    %v1444 = vmul.f32 %v1441, %v1443
    %v1445 = vadd.f32 %v1441, %v1444
    %vm1446 = vweird.f32 %v1440
    %vm1447 = vweird.f32 %v1441
    %vm1448 = vmor %vm1446, %vm1447
    %v1449 = vsel %vm1448, %v1441, %v1445
    %v1450 = vand.u32 2147483647, %v1440
    %vm1451 = vcmp.eq.f32.partialorder %v1450, 8.507059e+37
    %v1452 = vand.u32 %v1440, 2147483648
    %v1453 = vor.u32 1.1754944e-38, %v1452
    %v1454 = vsel %vm1451, %v1453, %v1449
    %v1455 = vmul.f32 1.0, %v1454
    %v1456 = vtanh.pop %v1436
    %v1457 = vmul.f32 %v1455, %v1236
    %1459 = vrot.lane.b32.xlu0 %v1456, 64
    %v1460 = vpop.permute.xlu0 %1459
    %v1462 = vmul.f32 %v1455, %v1460
    %1464 = vrot.lane.b32.xlu0 %v1462, 32
    %v1465 = vpop.permute.xlu0 %1464
    %v1467 = vadd.f32 %v1457, %v1465
    %v1468 = vtanh.pop %v1467
    %1470 = vrot.lane.b32.xlu0 %v1468, 64
    %v1471 = vpop.permute.xlu0 %1470
    %v1473 = vmul.f32 %v1455, %v1471
    %1475 = vrot.lane.b32.xlu0 %v1473, 32
    %v1476 = vpop.permute.xlu0 %1475
    %v1477 = vsel %vm212, %v1476, 0
    %1479 = vmatpush.msra.mxu0 0.0
    %1480 = vmatpush.msra.mxu0 0.0
    %1481 = vmatpush.msra.mxu0 0.0
    %1482 = vmatpush.msra.mxu0 0.0
    %1483 = vmatpush.msra.mxu0 0.0
    %1484 = vmatpush.msra.mxu0 0.0
    %1485 = vmatpush.msra.mxu0 0.0
    %1486 = vmatpush.msra.mxu0 0.0
    %1487 = vmatpush.msra.mxu0 0.0
    %1488 = vmatpush.msra.mxu0 0.0
    %1489 = vmatpush.msra.mxu0 0.0
    %1490 = vmatpush.msra.mxu0 0.0
    %1491 = vmatpush.msra.mxu0 %v163
    %1492 = vmatpush.msra.mxu0 %v161
    %1493 = vmatpush.msra.mxu0 %v159
    %1494 = vmatpush.msra.mxu0 %v157
    %1495 = vmatmul.f32.gmra.mxu0 %v1477
    %v1496 = vpop.f32.mrf.mxu0
    %v1497 = vadd.f32 0.0, %v1496
    %1498 = vdwg.mxu0
    %1499 = vmatpush.msra.mxu0 0.0
    %1500 = vmatpush.msra.mxu0 0.0
    %1501 = vmatpush.msra.mxu0 0.0
    %1502 = vmatpush.msra.mxu0 0.0
    %1503 = vmatpush.msra.mxu0 0.0
    %1504 = vmatpush.msra.mxu0 0.0
    %1505 = vmatpush.msra.mxu0 0.0
    %1506 = vmatpush.msra.mxu0 0.0
    %1507 = vmatpush.msra.mxu0 0.0
    %1508 = vmatpush.msra.mxu0 0.0
    %1509 = vmatpush.msra.mxu0 0.0
    %1510 = vmatpush.msra.mxu0 0.0
    %1511 = vmatpush.msra.mxu0 %v164
    %1512 = vmatpush.msra.mxu0 %v162
    %1513 = vmatpush.msra.mxu0 %v160
    %1514 = vmatpush.msra.mxu0 %v158
    %1515 = vmatmul.f32.gmra.mxu0 %v1477
    %v1516 = vpop.f32.mrf.mxu0
    %v1517 = vadd.f32 0.0, %v1516
    %1518 = vdwg.mxu0
    %v1519 = vadd.f32 %v1286, %v1350
    %v1520 = vadd.f32 %v1519, %v594
    %v1521 = vxor.u32 %v1520, 2147483648
    %v1522 = vmul.f32 %v1521, 1.442695
    %v1523 = vpow.pop %v1522
    %v1524 = vadd.f32 %v1523, 1.0
    %v1525 = vrcp.pop %v1524
    %v1526 = vmul.f32 %v1524, %v1525
    %v1527 = vsub.f32 1.0, %v1526
    %v1528 = vmul.f32 %v1525, %v1527
    %v1529 = vadd.f32 %v1525, %v1528
    %vm1530 = vweird.f32 %v1524
    %vm1531 = vweird.f32 %v1525
    %vm1532 = vmor %vm1530, %vm1531
    %v1533 = vsel %vm1532, %v1525, %v1529
    %v1534 = vand.u32 2147483647, %v1524
    %vm1535 = vcmp.eq.f32.partialorder %v1534, 8.507059e+37
    %v1536 = vand.u32 %v1524, 2147483648
    %v1537 = vor.u32 1.1754944e-38, %v1536
    %v1538 = vsel %vm1535, %v1537, %v1533
    %v1539 = vmul.f32 1.0, %v1538
    %v1540 = vtanh.pop %v1520
    %v1541 = vmul.f32 %v1539, %v1320
    %1543 = vrot.lane.b32.xlu0 %v1540, 64
    %v1544 = vpop.permute.xlu0 %1543
    %v1546 = vmul.f32 %v1539, %v1544
    %1548 = vrot.lane.b32.xlu0 %v1546, 32
    %v1549 = vpop.permute.xlu0 %1548
    %v1551 = vadd.f32 %v1541, %v1549
    %v1552 = vtanh.pop %v1551
    %1554 = vrot.lane.b32.xlu0 %v1552, 64
    %v1555 = vpop.permute.xlu0 %1554
    %v1557 = vmul.f32 %v1539, %v1555
    %1559 = vrot.lane.b32.xlu0 %v1557, 32
    %v1560 = vpop.permute.xlu0 %1559
    %v1561 = vsel %vm212, %v1560, 0
    %1563 = vmatpush.msra.mxu0 0.0
    %1564 = vmatpush.msra.mxu0 0.0
    %1565 = vmatpush.msra.mxu0 0.0
    %1566 = vmatpush.msra.mxu0 0.0
    %1567 = vmatpush.msra.mxu0 0.0
    %1568 = vmatpush.msra.mxu0 0.0
    %1569 = vmatpush.msra.mxu0 0.0
    %1570 = vmatpush.msra.mxu0 0.0
    %1571 = vmatpush.msra.mxu0 0.0
    %1572 = vmatpush.msra.mxu0 0.0
    %1573 = vmatpush.msra.mxu0 0.0
    %1574 = vmatpush.msra.mxu0 0.0
    %1575 = vmatpush.msra.mxu0 %v168
    %1576 = vmatpush.msra.mxu0 %v167
    %1577 = vmatpush.msra.mxu0 %v166
    %1578 = vmatpush.msra.mxu0 %v165
    %1579 = vmatmul.f32.gmra.mxu0 %v1561
    %v1580 = vpop.f32.mrf.mxu0
    %v1581 = vadd.f32 0.0, %v1580
    %1582 = vdwg.mxu0
    %v1583 = vadd.f32 %v147, %v1413
    %v1584 = vxor.u32 %v1583, 2147483648
    %v1585 = vmul.f32 %v1584, 1.442695
    %v1586 = vpow.pop %v1585
    %v1587 = vadd.f32 %v1586, 1.0
    %v1588 = vrcp.pop %v1587
    %v1589 = vmul.f32 %v1587, %v1588
    %v1590 = vsub.f32 1.0, %v1589
    %v1591 = vmul.f32 %v1588, %v1590
    %v1592 = vadd.f32 %v1588, %v1591
    %vm1593 = vweird.f32 %v1587
    %vm1594 = vweird.f32 %v1588
    %vm1595 = vmor %vm1593, %vm1594
    %v1596 = vsel %vm1595, %v1588, %v1592
    %v1597 = vand.u32 2147483647, %v1587
    %vm1598 = vcmp.eq.f32.partialorder %v1597, 8.507059e+37
    %v1599 = vand.u32 %v1587, 2147483648
    %v1600 = vor.u32 1.1754944e-38, %v1599
    %v1601 = vsel %vm1598, %v1600, %v1596
    %v1602 = vmul.f32 1.0, %v1601
    %v1603 = vtanh.pop %v1583
    %v1604 = vmul.f32 %v1602, %v1383
    %1606 = vrot.lane.b32.xlu0 %v1603, 64
    %v1607 = vpop.permute.xlu0 %1606
    %v1609 = vmul.f32 %v1602, %v1607
    %1611 = vrot.lane.b32.xlu0 %v1609, 32
    %v1612 = vpop.permute.xlu0 %1611
    %v1614 = vadd.f32 %v1604, %v1612
    %v1615 = vtanh.pop %v1614
    %1617 = vrot.lane.b32.xlu0 %v1615, 64
    %v1618 = vpop.permute.xlu0 %1617
    %v1620 = vmul.f32 %v1602, %v1618
    %1622 = vrot.lane.b32.xlu0 %v1620, 32
    %v1623 = vpop.permute.xlu0 %1622
    %v1624 = vsel %vm212, %v1623, 0
    %1626 = vmatpush.msra.mxu0 0.0
    %1627 = vmatpush.msra.mxu0 0.0
    %1628 = vmatpush.msra.mxu0 0.0
    %1629 = vmatpush.msra.mxu0 0.0
    %1630 = vmatpush.msra.mxu0 0.0
    %1631 = vmatpush.msra.mxu0 0.0
    %1632 = vmatpush.msra.mxu0 0.0
    %1633 = vmatpush.msra.mxu0 0.0
    %1634 = vmatpush.msra.mxu0 0.0
    %1635 = vmatpush.msra.mxu0 0.0
    %1636 = vmatpush.msra.mxu0 0.0
    %1637 = vmatpush.msra.mxu0 0.0
    %1638 = vmatpush.msra.mxu0 %v156
    %1639 = vmatpush.msra.mxu0 %v154
    %1640 = vmatpush.msra.mxu0 %v152
    %1641 = vmatpush.msra.mxu0 %v150
    %1642 = vmatmul.f32.gmra.mxu0 %v1624
    %v1643 = vpop.f32.mrf.mxu0
    %v1644 = vadd.f32 0.0, %v1643
    %1645 = vdwg.mxu0
    %v1646 = vadd.f32 %v1433, %v1497
    %v1647 = vadd.f32 %v1646, %v340
    %v1648 = vxor.u32 %v1647, 2147483648
    %v1649 = vmul.f32 %v1648, 1.442695
    %v1650 = vpow.pop %v1649
    %v1651 = vadd.f32 %v1650, 1.0
    %v1652 = vrcp.pop %v1651
    %v1653 = vmul.f32 %v1651, %v1652
    %v1654 = vsub.f32 1.0, %v1653
    %v1655 = vmul.f32 %v1652, %v1654
    %v1656 = vadd.f32 %v1652, %v1655
    %vm1657 = vweird.f32 %v1651
    %vm1658 = vweird.f32 %v1652
    %vm1659 = vmor %vm1657, %vm1658
    %v1660 = vsel %vm1659, %v1652, %v1656
    %v1661 = vand.u32 2147483647, %v1651
    %vm1662 = vcmp.eq.f32.partialorder %v1661, 8.507059e+37
    %v1663 = vand.u32 %v1651, 2147483648
    %v1664 = vor.u32 1.1754944e-38, %v1663
    %v1665 = vsel %vm1662, %v1664, %v1660
    %v1666 = vmul.f32 1.0, %v1665
    %v1667 = vtanh.pop %v1647
    %v1668 = vmul.f32 %v1666, %v1467
    %1670 = vrot.lane.b32.xlu0 %v1667, 64
    %v1671 = vpop.permute.xlu0 %1670
    %v1673 = vmul.f32 %v1666, %v1671
    %1675 = vrot.lane.b32.xlu0 %v1673, 32
    %v1676 = vpop.permute.xlu0 %1675
    %v1678 = vadd.f32 %v1668, %v1676
    %v1679 = vtanh.pop %v1678
    %1681 = vrot.lane.b32.xlu0 %v1679, 64
    %v1682 = vpop.permute.xlu0 %1681
    %v1684 = vmul.f32 %v1666, %v1682
    %1686 = vrot.lane.b32.xlu0 %v1684, 32
    %v1687 = vpop.permute.xlu0 %1686
    %v1688 = vsel %vm212, %v1687, 0
    %1690 = vmatpush.msra.mxu0 0.0
    %1691 = vmatpush.msra.mxu0 0.0
    %1692 = vmatpush.msra.mxu0 0.0
    %1693 = vmatpush.msra.mxu0 0.0
    %1694 = vmatpush.msra.mxu0 0.0
    %1695 = vmatpush.msra.mxu0 0.0
    %1696 = vmatpush.msra.mxu0 0.0
    %1697 = vmatpush.msra.mxu0 0.0
    %1698 = vmatpush.msra.mxu0 0.0
    %1699 = vmatpush.msra.mxu0 0.0
    %1700 = vmatpush.msra.mxu0 0.0
    %1701 = vmatpush.msra.mxu0 0.0
    %1702 = vmatpush.msra.mxu0 %v163
    %1703 = vmatpush.msra.mxu0 %v161
    %1704 = vmatpush.msra.mxu0 %v159
    %1705 = vmatpush.msra.mxu0 %v157
    %1706 = vmatmul.f32.gmra.mxu0 %v1688
    %v1707 = vpop.f32.mrf.mxu0
    %v1708 = vadd.f32 0.0, %v1707
    %1709 = vdwg.mxu0
    %1710 = vmatpush.msra.mxu0 0.0
    %1711 = vmatpush.msra.mxu0 0.0
    %1712 = vmatpush.msra.mxu0 0.0
    %1713 = vmatpush.msra.mxu0 0.0
    %1714 = vmatpush.msra.mxu0 0.0
    %1715 = vmatpush.msra.mxu0 0.0
    %1716 = vmatpush.msra.mxu0 0.0
    %1717 = vmatpush.msra.mxu0 0.0
    %1718 = vmatpush.msra.mxu0 0.0
    %1719 = vmatpush.msra.mxu0 0.0
    %1720 = vmatpush.msra.mxu0 0.0
    %1721 = vmatpush.msra.mxu0 0.0
    %1722 = vmatpush.msra.mxu0 %v164
    %1723 = vmatpush.msra.mxu0 %v162
    %1724 = vmatpush.msra.mxu0 %v160
    %1725 = vmatpush.msra.mxu0 %v158
    %1726 = vmatmul.f32.gmra.mxu0 %v1688
    %v1727 = vpop.f32.mrf.mxu0
    %v1728 = vadd.f32 0.0, %v1727
    %1729 = vdwg.mxu0
    %v1730 = vadd.f32 %v1517, %v1581
    %v1731 = vadd.f32 %v1730, %v594
    %v1732 = vxor.u32 %v1731, 2147483648
    %v1733 = vmul.f32 %v1732, 1.442695
    %v1734 = vpow.pop %v1733
    %v1735 = vadd.f32 %v1734, 1.0
    %v1736 = vrcp.pop %v1735
    %v1737 = vmul.f32 %v1735, %v1736
    %v1738 = vsub.f32 1.0, %v1737
    %v1739 = vmul.f32 %v1736, %v1738
    %v1740 = vadd.f32 %v1736, %v1739
    %vm1741 = vweird.f32 %v1735
    %vm1742 = vweird.f32 %v1736
    %vm1743 = vmor %vm1741, %vm1742
    %v1744 = vsel %vm1743, %v1736, %v1740
    %v1745 = vand.u32 2147483647, %v1735
    %vm1746 = vcmp.eq.f32.partialorder %v1745, 8.507059e+37
    %v1747 = vand.u32 %v1735, 2147483648
    %v1748 = vor.u32 1.1754944e-38, %v1747
    %v1749 = vsel %vm1746, %v1748, %v1744
    %v1750 = vmul.f32 1.0, %v1749
    %v1751 = vtanh.pop %v1731
    %v1752 = vmul.f32 %v1750, %v1551
    %1754 = vrot.lane.b32.xlu0 %v1751, 64
    %v1755 = vpop.permute.xlu0 %1754
    %v1757 = vmul.f32 %v1750, %v1755
    %1759 = vrot.lane.b32.xlu0 %v1757, 32
    %v1760 = vpop.permute.xlu0 %1759
    %v1762 = vadd.f32 %v1752, %v1760
    %v1763 = vtanh.pop %v1762
    %1765 = vrot.lane.b32.xlu0 %v1763, 64
    %v1766 = vpop.permute.xlu0 %1765
    %v1768 = vmul.f32 %v1750, %v1766
    %1770 = vrot.lane.b32.xlu0 %v1768, 32
    %v1771 = vpop.permute.xlu0 %1770
    %v1772 = vsel %vm212, %v1771, 0
    %1774 = vmatpush.msra.mxu0 0.0
    %1775 = vmatpush.msra.mxu0 0.0
    %1776 = vmatpush.msra.mxu0 0.0
    %1777 = vmatpush.msra.mxu0 0.0
    %1778 = vmatpush.msra.mxu0 0.0
    %1779 = vmatpush.msra.mxu0 0.0
    %1780 = vmatpush.msra.mxu0 0.0
    %1781 = vmatpush.msra.mxu0 0.0
    %1782 = vmatpush.msra.mxu0 0.0
    %1783 = vmatpush.msra.mxu0 0.0
    %1784 = vmatpush.msra.mxu0 0.0
    %1785 = vmatpush.msra.mxu0 0.0
    %1786 = vmatpush.msra.mxu0 %v168
    %1787 = vmatpush.msra.mxu0 %v167
    %1788 = vmatpush.msra.mxu0 %v166
    %1789 = vmatpush.msra.mxu0 %v165
    %1790 = vmatmul.f32.gmra.mxu0 %v1772
    %v1791 = vpop.f32.mrf.mxu0
    %v1792 = vadd.f32 0.0, %v1791
    %1793 = vdwg.mxu0
    %v1794 = vadd.f32 %v1644, %v1708
    %v1795 = vadd.f32 %v1794, %v340
    %v1796 = vxor.u32 %v1795, 2147483648
    %v1797 = vmul.f32 %v1796, 1.442695
    %v1798 = vpow.pop %v1797
    %v1799 = vadd.f32 %v1798, 1.0
    %v1800 = vrcp.pop %v1799
    %v1801 = vmul.f32 %v1799, %v1800
    %v1802 = vsub.f32 1.0, %v1801
    %v1803 = vmul.f32 %v1800, %v1802
    %v1804 = vadd.f32 %v1800, %v1803
    %vm1805 = vweird.f32 %v1799
    %vm1806 = vweird.f32 %v1800
    %vm1807 = vmor %vm1805, %vm1806
    %v1808 = vsel %vm1807, %v1800, %v1804
    %v1809 = vand.u32 2147483647, %v1799
    %vm1810 = vcmp.eq.f32.partialorder %v1809, 8.507059e+37
    %v1811 = vand.u32 %v1799, 2147483648
    %v1812 = vor.u32 1.1754944e-38, %v1811
    %v1813 = vsel %vm1810, %v1812, %v1808
    %v1814 = vmul.f32 1.0, %v1813
    %v1815 = vtanh.pop %v1795
    %v1816 = vmul.f32 %v1814, %v1678
    %1818 = vrot.lane.b32.xlu0 %v1815, 64
    %v1819 = vpop.permute.xlu0 %1818
    %v1821 = vmul.f32 %v1814, %v1819
    %1823 = vrot.lane.b32.xlu0 %v1821, 32
    %v1824 = vpop.permute.xlu0 %1823
    %v1826 = vadd.f32 %v1816, %v1824
    %v1827 = vtanh.pop %v1826
    %1829 = vrot.lane.b32.xlu0 %v1827, 64
    %v1830 = vpop.permute.xlu0 %1829
    %v1832 = vmul.f32 %v1814, %v1830
    %1834 = vrot.lane.b32.xlu0 %v1832, 32
    %v1835 = vpop.permute.xlu0 %1834
    %v1836 = vsel %vm212, %v1835, 0
    %1838 = vmatpush.msra.mxu0 0.0
    %1839 = vmatpush.msra.mxu0 0.0
    %1840 = vmatpush.msra.mxu0 0.0
    %1841 = vmatpush.msra.mxu0 0.0
    %1842 = vmatpush.msra.mxu0 0.0
    %1843 = vmatpush.msra.mxu0 0.0
    %1844 = vmatpush.msra.mxu0 0.0
    %1845 = vmatpush.msra.mxu0 0.0
    %1846 = vmatpush.msra.mxu0 0.0
    %1847 = vmatpush.msra.mxu0 0.0
    %1848 = vmatpush.msra.mxu0 0.0
    %1849 = vmatpush.msra.mxu0 0.0
    %1850 = vmatpush.msra.mxu0 %v164
    %1851 = vmatpush.msra.mxu0 %v162
    %1852 = vmatpush.msra.mxu0 %v160
    %1853 = vmatpush.msra.mxu0 %v158
    %1854 = vmatmul.f32.gmra.mxu0 %v1836
    %v1855 = vpop.f32.mrf.mxu0
    %v1856 = vadd.f32 0.0, %v1855
    %1857 = vdwg.mxu0
    %v1858 = vadd.f32 %v1728, %v1792
    %v1859 = vadd.f32 %v1858, %v594
    %v1860 = vxor.u32 %v1859, 2147483648
    %v1861 = vmul.f32 %v1860, 1.442695
    %v1862 = vpow.pop %v1861
    %v1863 = vadd.f32 %v1862, 1.0
    %v1864 = vrcp.pop %v1863
    %v1865 = vmul.f32 %v1863, %v1864
    %v1866 = vsub.f32 1.0, %v1865
    %v1867 = vmul.f32 %v1864, %v1866
    %v1868 = vadd.f32 %v1864, %v1867
    %vm1869 = vweird.f32 %v1863
    %vm1870 = vweird.f32 %v1864
    %vm1871 = vmor %vm1869, %vm1870
    %v1872 = vsel %vm1871, %v1864, %v1868
    %v1873 = vand.u32 2147483647, %v1863
    %vm1874 = vcmp.eq.f32.partialorder %v1873, 8.507059e+37
    %v1875 = vand.u32 %v1863, 2147483648
    %v1876 = vor.u32 1.1754944e-38, %v1875
    %v1877 = vsel %vm1874, %v1876, %v1872
    %v1878 = vmul.f32 1.0, %v1877
    %v1879 = vtanh.pop %v1859
    %v1880 = vmul.f32 %v1878, %v1762
    %1882 = vrot.lane.b32.xlu0 %v1879, 64
    %v1883 = vpop.permute.xlu0 %1882
    %v1885 = vmul.f32 %v1878, %v1883
    %1887 = vrot.lane.b32.xlu0 %v1885, 32
    %v1888 = vpop.permute.xlu0 %1887
    %v1890 = vadd.f32 %v1880, %v1888
    %v1891 = vtanh.pop %v1890
    %1893 = vrot.lane.b32.xlu0 %v1891, 64
    %v1894 = vpop.permute.xlu0 %1893
    %v1896 = vmul.f32 %v1878, %v1894
    %1898 = vrot.lane.b32.xlu0 %v1896, 32
    %v1899 = vpop.permute.xlu0 %1898
    %v1900 = vsel %vm212, %v1899, 0
    %1902 = vmatpush.msra.mxu0 0.0
    %1903 = vmatpush.msra.mxu0 0.0
    %1904 = vmatpush.msra.mxu0 0.0
    %1905 = vmatpush.msra.mxu0 0.0
    %1906 = vmatpush.msra.mxu0 0.0
    %1907 = vmatpush.msra.mxu0 0.0
    %1908 = vmatpush.msra.mxu0 0.0
    %1909 = vmatpush.msra.mxu0 0.0
    %1910 = vmatpush.msra.mxu0 0.0
    %1911 = vmatpush.msra.mxu0 0.0
    %1912 = vmatpush.msra.mxu0 0.0
    %1913 = vmatpush.msra.mxu0 0.0
    %1914 = vmatpush.msra.mxu0 %v168
    %1915 = vmatpush.msra.mxu0 %v167
    %1916 = vmatpush.msra.mxu0 %v166
    %1917 = vmatpush.msra.mxu0 %v165
    %1918 = vmatmul.f32.gmra.mxu0 %v1900
    %v1919 = vpop.f32.mrf.mxu0
    %v1920 = vadd.f32 0.0, %v1919
    %1921 = vdwg.mxu0
    %v1922 = vadd.f32 %v1856, %v1920
    %v1923 = vadd.f32 %v1922, %v594
    %v1924 = vxor.u32 %v1923, 2147483648
    %v1925 = vmul.f32 %v1924, 1.442695
    %v1926 = vpow.pop %v1925
    %v1927 = vadd.f32 %v1926, 1.0
    %v1928 = vrcp.pop %v1927
    %v1929 = vmul.f32 %v1927, %v1928
    %v1930 = vsub.f32 1.0, %v1929
    %v1931 = vmul.f32 %v1928, %v1930
    %v1932 = vadd.f32 %v1928, %v1931
    %vm1933 = vweird.f32 %v1927
    %vm1934 = vweird.f32 %v1928
    %vm1935 = vmor %vm1933, %vm1934
    %v1936 = vsel %vm1935, %v1928, %v1932
    %v1937 = vand.u32 2147483647, %v1927
    %vm1938 = vcmp.eq.f32.partialorder %v1937, 8.507059e+37
    %v1939 = vand.u32 %v1927, 2147483648
    %v1940 = vor.u32 1.1754944e-38, %v1939
    %v1941 = vsel %vm1938, %v1940, %v1936
    %v1942 = vmul.f32 1.0, %v1941
    %v1943 = vtanh.pop %v1923
    %v1944 = vmul.f32 %v1942, %v1890
    %1946 = vrot.lane.b32.xlu0 %v1943, 64
    %v1947 = vpop.permute.xlu0 %1946
    %v1949 = vmul.f32 %v1942, %v1947
    %1951 = vrot.lane.b32.xlu0 %v1949, 32
    %v1952 = vpop.permute.xlu0 %1951
    %v1954 = vadd.f32 %v1944, %v1952
    %v1955 = vtanh.pop %v1954
    %1957 = vrot.lane.b32.xlu0 %v1955, 64
    %v1958 = vpop.permute.xlu0 %1957
    %v1960 = vmul.f32 %v1942, %v1958
    %v1961 = vld [vmem:[%s8] sm:$0x1]
    %v1963 = vperm.slane %v1961, 0
    %1964 = vrot.lane.b32.xlu0 %v1963, 96
    %v1965 = vpop.permute.xlu0 %1964
    %v1967 = vmul.f32 %v1960, %v1965
    %1969 = vrot.lane.b32.xlu0 %v1967, 32
    %v1970 = vpop.permute.xlu0 %1969
    %v1972 = vsel %vm212, %v1970, 0.0
    %1973 = vadd.xlane.f32.xlu0 %v1972
    %v1974 = vpop.xlane.xlu0 %1973
    %v1975 = vld [vmem:[#allocation2] sm:$0x1]
    %v1977 = vperm.slane %v1975, 0
    %v1979 = vadd.f32 %v1974, %v1977
    %v1980 = vmax.f32 %v1979, 0.0
    %vm1981 = vcmask 7168
    %1982 = vst.msk [vmem:[%s10] sm:$0xff] %vm1981, %v1980
    // Predicated region
    $region50: #{lstm_model_forward.1} parent=1 // pred_check
      _
    $region51: #{lstm_model_forward.1} parent=1 // pred_check_branch
      %1984 = sbr.rel (0) target = $region53
    $region52: #{lstm_model_forward.1} parent=1 // pred_region
      _
    $region53: #{lstm_model_forward.1} parent=1 // pred_fallthru
      _
    // Predicated region
    $region54: #{lstm_model_forward.1} parent=1 // pred_check
      _
    $region55: #{lstm_model_forward.1} parent=1 // pred_check_branch
      %1986 = sbr.rel (0) target = $region57
    $region56: #{lstm_model_forward.1} parent=1 // pred_region
      _
    $region57: #{lstm_model_forward.1} parent=1 // pred_fallthru
      _
    %1987 = vsyncpa [#allocation4], 1
    %1988 = vsyncpa [#allocation6], 1

</llo_original>
